<compile_context>
chip_gen: v7x
topology: tpu7x:2x2x1
jax: 0.10.0
libtpu: 0.0.40
codegen_flags: <defaults>
</compile_context>

<pallas_src>
import functools

import jax
import jax.numpy as jnp
import numpy as np
from jax import lax
from jax.experimental import pallas as pl
from jax.experimental.pallas import tpu as pltpu


def lstm_head_kernel(emb_ref, wih_ref, whh_ref, b_ref, h0_ref, c0_ref,
                     wout_ref, bout_ref, out_ref, xg_scr,
                     *, seq_len, batch, hidden):
    """Fused LSTM recurrence + Linear + LogSoftmax, all resident in VMEM.

    Gate layout: PyTorch gate order [i, f, g, o] packed contiguously along the
    lane axis (total width 4*hidden = 128 for hidden = 32), so each serial
    step is a single small MXU matmul plus packed VPU/EUP work.
    """
    h = hidden
    gdim = 4 * h

    # ---- hoisted, loop-invariant input projection: one big MXU matmul ------
    xg_scr[...] = (jnp.dot(emb_ref[...], wih_ref[...],
                           precision=lax.Precision.DEFAULT,
                           preferred_element_type=jnp.float32)
                   + b_ref[...])                                  # (T*B, 4H)

    # Loop-invariant lane mask selecting the tanh ('g') gate lanes.
    lane = lax.broadcasted_iota(jnp.int32, (batch, gdim), 1)
    g_lane = (lane >= 2 * h) & (lane < 3 * h)

    whh = whh_ref[...]                                            # (H, 4H)

    def step(t, carry):
        h_t, c_t = carry                                          # (B, H) vregs
        base = t * batch
        if batch % 8 == 0:
            base = pl.multiple_of(base, 8)                        # sublane-aligned
        xg = xg_scr[pl.ds(base, batch), :]                        # (B, 4H)
        gates = xg + jnp.dot(h_t, whh,
                             precision=lax.Precision.DEFAULT,
                             preferred_element_type=jnp.float32)  # (B, 4H)
        # Two packed transcendentals + VPU select instead of four per-gate
        # transcendentals over padded 128-lane blocks.
        sig = jax.nn.sigmoid(gates)
        tnh = jnp.tanh(gates)
        act = jnp.where(g_lane, tnh, sig)
        i_g = act[:, 0 * h:1 * h]
        f_g = act[:, 1 * h:2 * h]
        g_g = act[:, 2 * h:3 * h]
        o_g = act[:, 3 * h:4 * h]
        c_new = f_g * c_t + i_g * g_g
        h_new = o_g * jnp.tanh(c_new)
        return h_new, c_new

    # Small static trip count -> fully unroll; h/c stay register-resident.
    h_T, _ = lax.fori_loop(0, seq_len, step, (h0_ref[...], c0_ref[...]),
                           unroll=True)

    # TODO(synk): nn.Dropout(p=0.2) is identity in eval mode; train-mode
    # stochastic masking is not reproduced here.
    logits = (jnp.dot(h_T, wout_ref[...],
                      precision=lax.Precision.DEFAULT,
                      preferred_element_type=jnp.float32)
              + bout_ref[...])                                    # (B, OUT)

    # Numerically stable LogSoftmax over the last dim.
    m = jnp.max(logits, axis=-1, keepdims=True)
    z = logits - m
    lse = jnp.log(jnp.sum(jnp.exp(z), axis=-1, keepdims=True))
    out_ref[...] = z - lse


def lstm_forward(token_ids, params):
    B, T = token_ids.shape
    E = params["embedding"].shape[1]
    H = params["w_hh"].shape[0]
    OUT = params["w_out"].shape[1]

    # Embedding gather is input-dependent glue; gather transposed ids so the
    # slab is produced time-major (T, B, E) with no float transpose.  All
    # weights are already in the packed (in, 4H) layout, so no per-call
    # re-layout / padding ops remain in the wrapper.
    emb_tb = jnp.take(params["embedding"], token_ids.T, axis=0)   # (T, B, E)
    emb_2d = emb_tb.reshape(T * B, E)                             # (T*B, E)

    kernel = functools.partial(lstm_head_kernel, seq_len=T, batch=B, hidden=H)
    return pl.pallas_call(
        kernel,
        out_shape=jax.ShapeDtypeStruct((B, OUT), jnp.float32),
        in_specs=[pl.BlockSpec(memory_space=pltpu.MemorySpace.VMEM)] * 8,
        out_specs=pl.BlockSpec(memory_space=pltpu.MemorySpace.VMEM),
        scratch_shapes=[pltpu.VMEM((T * B, 4 * H), jnp.float32)],  # gate slab
        compiler_params=pltpu.CompilerParams(
            vmem_limit_bytes=32 * 1024 * 1024),
    )(emb_2d, params["w_ih"], params["w_hh"], params["b"],
      params["h0"], params["c0"], params["w_out"], params["b_out"])


def lstm_forward_ref(token_ids, params):
    """Pure-JAX reference with identical semantics, for a correctness check."""
    embeds = jnp.take(params["embedding"], token_ids, axis=0)
    H = params["w_hh"].shape[0]

    def step(carry, x_t):
        h, c = carry
        gates = x_t @ params["w_ih"] + h @ params["w_hh"] + params["b"][0]
        i = jax.nn.sigmoid(gates[:, 0 * H:1 * H])
        f = jax.nn.sigmoid(gates[:, 1 * H:2 * H])
        g = jnp.tanh(gates[:, 2 * H:3 * H])
        o = jax.nn.sigmoid(gates[:, 3 * H:4 * H])
        c = f * c + i * g
        h = o * jnp.tanh(c)
        return (h, c), None

    (h, _), _ = lax.scan(step, (params["h0"], params["c0"]),
                         jnp.transpose(embeds, (1, 0, 2)))
    logits = h @ params["w_out"] + params["b_out"][0]
    return jax.nn.log_softmax(logits, axis=-1)


if __name__ == "__main__":
    # Small shapes consistent with the module's forward:
    #   token ids (B, T) -> embeddings (B, T, E) -> LSTM hidden H -> logits (B, 2)
    B, T = 8, 12
    VOCAB, E, H, OUT = 1000, 64, 32, 2

    key = jax.random.PRNGKey(0)
    keys = jax.random.split(key, 10)
    s = 1.0 / float(np.sqrt(H))

    params = {
        # nn.Embedding(vocab, E): N(0, 1)
        "embedding": jax.random.normal(keys[0], (VOCAB, E), jnp.float32),
        # nn.LSTM weights, pre-transposed once to (in, 4H), PyTorch gate order
        # [i, f, g, o]; the two biases b_ih + b_hh combined (one-time prep).
        "w_ih": jax.random.uniform(keys[1], (E, 4 * H), jnp.float32, -s, s),
        "w_hh": jax.random.uniform(keys[2], (H, 4 * H), jnp.float32, -s, s),
        "b":    jax.random.uniform(keys[3], (1, 4 * H), jnp.float32, -s, s),
        # init_hidden(): torch.randn(1, B, H) -> squeeze leading 1.
        # TODO(synk): PyTorch re-samples h0/c0 per forward; here they are inputs.
        "h0": jax.random.normal(keys[4], (B, H), jnp.float32),
        "c0": jax.random.normal(keys[5], (B, H), jnp.float32),
        # nn.Linear(H, 2), pre-transposed to (H, 2)
        "w_out": jax.random.uniform(keys[6], (H, OUT), jnp.float32, -s, s),
        "b_out": jax.random.uniform(keys[7], (1, OUT), jnp.float32, -s, s),
    }

    x = jax.random.randint(keys[8], (B, T), 0, VOCAB, dtype=jnp.int32)

    out = jax.block_until_ready(lstm_forward(x, params))
    ref = lstm_forward_ref(x, params)

    assert out.shape == (B, OUT)
    np.testing.assert_allclose(np.asarray(out), np.asarray(ref),
                               rtol=2e-4, atol=2e-5)
    print("KERNEL_OK")
</pallas_src>

<mosaic_0001>
module attributes {stable_mosaic.version = 11 : i64} {
  func.func @lstm_head_kernel(%arg0: memref<96x64xf32, #tpu.memory_space<vmem>>, %arg1: memref<64x128xf32, #tpu.memory_space<vmem>>, %arg2: memref<32x128xf32, #tpu.memory_space<vmem>>, %arg3: memref<1x128xf32, #tpu.memory_space<vmem>>, %arg4: memref<8x32xf32, #tpu.memory_space<vmem>>, %arg5: memref<8x32xf32, #tpu.memory_space<vmem>>, %arg6: memref<32x2xf32, #tpu.memory_space<vmem>>, %arg7: memref<1x2xf32, #tpu.memory_space<vmem>>, %arg8: memref<8x2xf32, #tpu.memory_space<vmem>>, %arg9: memref<96x128xf32, #tpu.memory_space<vmem>>) attributes {dimension_semantics = [], scalar_prefetch = 0 : i64, scratch_operands = 1 : i64, tpu.core_type = #tpu.core_type<tc>} {
    %c0 = arith.constant 0 : index
    %c0_0 = arith.constant 0 : index
    %0 = vector.load %arg0[%c0, %c0_0] : memref<96x64xf32, #tpu.memory_space<vmem>>, vector<96x64xf32>
    %c0_1 = arith.constant 0 : index
    %c0_2 = arith.constant 0 : index
    %1 = vector.load %arg1[%c0_1, %c0_2] : memref<64x128xf32, #tpu.memory_space<vmem>>, vector<64x128xf32>
    %cst = arith.constant dense<0.000000e+00> : vector<96x128xf32>
    %2 = tpu.matmul %0, %1, %cst {dimension_numbers = #tpu.dot_dimension_numbers<[1], [0], [0], [1], [0, 0, 1, 1], [], []>} : vector<96x64xf32>, vector<64x128xf32>, vector<96x128xf32> -> vector<96x128xf32>
    %c0_3 = arith.constant 0 : index
    %c0_4 = arith.constant 0 : index
    %3 = vector.load %arg3[%c0_3, %c0_4] : memref<1x128xf32, #tpu.memory_space<vmem>>, vector<1x128xf32>
    %4 = vector.broadcast %3 : vector<1x128xf32> to vector<96x128xf32>
    %5 = arith.addf %2, %4 : vector<96x128xf32>
    %c0_5 = arith.constant 0 : index
    %c0_6 = arith.constant 0 : index
    %6 = vector.load %arg9[%c0_5, %c0_6] : memref<96x128xf32, #tpu.memory_space<vmem>>, vector<96x128xf32>
    tpu.vector_store %arg9[%c0_5, %c0_6], %5 {strides = array<i32>} : memref<96x128xf32, #tpu.memory_space<vmem>>, vector<96x128xf32>,
    %7 = tpu.iota {dimensions = array<i32: 1>} : vector<8x128xi32>
    %c64_i32 = arith.constant 64 : i32
    %8 = vector.broadcast %c64_i32 : i32 to vector<8x128xi32>
    %9 = arith.cmpi sge, %7, %8 : vector<8x128xi32>
    %c96_i32 = arith.constant 96 : i32
    %10 = vector.broadcast %c96_i32 : i32 to vector<8x128xi32>
    %11 = arith.cmpi slt, %7, %10 : vector<8x128xi32>
    %12 = arith.andi %9, %11 : vector<8x128xi1>
    %c0_7 = arith.constant 0 : index
    %c0_8 = arith.constant 0 : index
    %13 = vector.load %arg2[%c0_7, %c0_8] : memref<32x128xf32, #tpu.memory_space<vmem>>, vector<32x128xf32>
    %c0_9 = arith.constant 0 : index
    %c0_10 = arith.constant 0 : index
    %14 = vector.load %arg4[%c0_9, %c0_10] : memref<8x32xf32, #tpu.memory_space<vmem>>, vector<8x32xf32>
    %c0_11 = arith.constant 0 : index
    %c0_12 = arith.constant 0 : index
    %15 = vector.load %arg5[%c0_11, %c0_12] : memref<8x32xf32, #tpu.memory_space<vmem>>, vector<8x32xf32>
    %c0_i32 = arith.constant 0 : i32
    %c8_i32 = arith.constant 8 : i32
    %16 = arith.muli %c0_i32, %c8_i32 : i32
    %17 = tpu.assume_multiple %16, 8 : i32
    %18 = arith.index_cast %17 : i32 to index
    %c0_13 = arith.constant 0 : index
    %19 = vector.load %arg9[%18, %c0_13] : memref<96x128xf32, #tpu.memory_space<vmem>>, vector<8x128xf32>
    %cst_14 = arith.constant dense<0.000000e+00> : vector<8x128xf32>
    %20 = tpu.matmul %14, %13, %cst_14 {dimension_numbers = #tpu.dot_dimension_numbers<[1], [0], [0], [1], [0, 0, 1, 1], [], []>} : vector<8x32xf32>, vector<32x128xf32>, vector<8x128xf32> -> vector<8x128xf32>
    %21 = arith.addf %19, %20 : vector<8x128xf32>
    %22 = arith.negf %21 : vector<8x128xf32>
    %23 = math.exp %22 : vector<8x128xf32>
    %cst_15 = arith.constant 1.000000e+00 : f32
    %24 = vector.broadcast %cst_15 : f32 to vector<8x128xf32>
    %25 = arith.addf %24, %23 : vector<8x128xf32>
    %26 = arith.divf %24, %25 : vector<8x128xf32>
    %27 = math.tanh %21 : vector<8x128xf32>
    %28 = arith.select %12, %27, %26 : vector<8x128xi1>, vector<8x128xf32>
    %29 = vector.extract_strided_slice %28 {offsets = [0, 0], sizes = [8, 32], strides = [1, 1]} : vector<8x128xf32> to vector<8x32xf32>
    %30 = vector.extract_strided_slice %28 {offsets = [0, 32], sizes = [8, 32], strides = [1, 1]} : vector<8x128xf32> to vector<8x32xf32>
    %31 = vector.extract_strided_slice %28 {offsets = [0, 64], sizes = [8, 32], strides = [1, 1]} : vector<8x128xf32> to vector<8x32xf32>
    %32 = vector.extract_strided_slice %28 {offsets = [0, 96], sizes = [8, 32], strides = [1, 1]} : vector<8x128xf32> to vector<8x32xf32>
    %33 = arith.mulf %30, %15 : vector<8x32xf32>
    %34 = arith.mulf %29, %31 : vector<8x32xf32>
    %35 = arith.addf %33, %34 : vector<8x32xf32>
    %36 = math.tanh %35 : vector<8x32xf32>
    %37 = arith.mulf %32, %36 : vector<8x32xf32>
    %c1_i32 = arith.constant 1 : i32
    %c8_i32_16 = arith.constant 8 : i32
    %38 = arith.muli %c1_i32, %c8_i32_16 : i32
    %39 = tpu.assume_multiple %38, 8 : i32
    %40 = arith.index_cast %39 : i32 to index
    %c0_17 = arith.constant 0 : index
    %41 = vector.load %arg9[%40, %c0_17] : memref<96x128xf32, #tpu.memory_space<vmem>>, vector<8x128xf32>
    %cst_18 = arith.constant dense<0.000000e+00> : vector<8x128xf32>
    %42 = tpu.matmul %37, %13, %cst_18 {dimension_numbers = #tpu.dot_dimension_numbers<[1], [0], [0], [1], [0, 0, 1, 1], [], []>} : vector<8x32xf32>, vector<32x128xf32>, vector<8x128xf32> -> vector<8x128xf32>
    %43 = arith.addf %41, %42 : vector<8x128xf32>
    %44 = arith.negf %43 : vector<8x128xf32>
    %45 = math.exp %44 : vector<8x128xf32>
    %cst_19 = arith.constant 1.000000e+00 : f32
    %46 = vector.broadcast %cst_19 : f32 to vector<8x128xf32>
    %47 = arith.addf %46, %45 : vector<8x128xf32>
    %48 = arith.divf %46, %47 : vector<8x128xf32>
    %49 = math.tanh %43 : vector<8x128xf32>
    %50 = arith.select %12, %49, %48 : vector<8x128xi1>, vector<8x128xf32>
    %51 = vector.extract_strided_slice %50 {offsets = [0, 0], sizes = [8, 32], strides = [1, 1]} : vector<8x128xf32> to vector<8x32xf32>
    %52 = vector.extract_strided_slice %50 {offsets = [0, 32], sizes = [8, 32], strides = [1, 1]} : vector<8x128xf32> to vector<8x32xf32>
    %53 = vector.extract_strided_slice %50 {offsets = [0, 64], sizes = [8, 32], strides = [1, 1]} : vector<8x128xf32> to vector<8x32xf32>
    %54 = vector.extract_strided_slice %50 {offsets = [0, 96], sizes = [8, 32], strides = [1, 1]} : vector<8x128xf32> to vector<8x32xf32>
    %55 = arith.mulf %52, %35 : vector<8x32xf32>
    %56 = arith.mulf %51, %53 : vector<8x32xf32>
    %57 = arith.addf %55, %56 : vector<8x32xf32>
    %58 = math.tanh %57 : vector<8x32xf32>
    %59 = arith.mulf %54, %58 : vector<8x32xf32>
    %c2_i32 = arith.constant 2 : i32
    %c8_i32_20 = arith.constant 8 : i32
    %60 = arith.muli %c2_i32, %c8_i32_20 : i32
    %61 = tpu.assume_multiple %60, 8 : i32
    %62 = arith.index_cast %61 : i32 to index
    %c0_21 = arith.constant 0 : index
    %63 = vector.load %arg9[%62, %c0_21] : memref<96x128xf32, #tpu.memory_space<vmem>>, vector<8x128xf32>
    %cst_22 = arith.constant dense<0.000000e+00> : vector<8x128xf32>
    %64 = tpu.matmul %59, %13, %cst_22 {dimension_numbers = #tpu.dot_dimension_numbers<[1], [0], [0], [1], [0, 0, 1, 1], [], []>} : vector<8x32xf32>, vector<32x128xf32>, vector<8x128xf32> -> vector<8x128xf32>
    %65 = arith.addf %63, %64 : vector<8x128xf32>
    %66 = arith.negf %65 : vector<8x128xf32>
    %67 = math.exp %66 : vector<8x128xf32>
    %cst_23 = arith.constant 1.000000e+00 : f32
    %68 = vector.broadcast %cst_23 : f32 to vector<8x128xf32>
    %69 = arith.addf %68, %67 : vector<8x128xf32>
    %70 = arith.divf %68, %69 : vector<8x128xf32>
    %71 = math.tanh %65 : vector<8x128xf32>
    %72 = arith.select %12, %71, %70 : vector<8x128xi1>, vector<8x128xf32>
    %73 = vector.extract_strided_slice %72 {offsets = [0, 0], sizes = [8, 32], strides = [1, 1]} : vector<8x128xf32> to vector<8x32xf32>
    %74 = vector.extract_strided_slice %72 {offsets = [0, 32], sizes = [8, 32], strides = [1, 1]} : vector<8x128xf32> to vector<8x32xf32>
    %75 = vector.extract_strided_slice %72 {offsets = [0, 64], sizes = [8, 32], strides = [1, 1]} : vector<8x128xf32> to vector<8x32xf32>
    %76 = vector.extract_strided_slice %72 {offsets = [0, 96], sizes = [8, 32], strides = [1, 1]} : vector<8x128xf32> to vector<8x32xf32>
    %77 = arith.mulf %74, %57 : vector<8x32xf32>
    %78 = arith.mulf %73, %75 : vector<8x32xf32>
    %79 = arith.addf %77, %78 : vector<8x32xf32>
    %80 = math.tanh %79 : vector<8x32xf32>
    %81 = arith.mulf %76, %80 : vector<8x32xf32>
    %c3_i32 = arith.constant 3 : i32
    %c8_i32_24 = arith.constant 8 : i32
    %82 = arith.muli %c3_i32, %c8_i32_24 : i32
    %83 = tpu.assume_multiple %82, 8 : i32
    %84 = arith.index_cast %83 : i32 to index
    %c0_25 = arith.constant 0 : index
    %85 = vector.load %arg9[%84, %c0_25] : memref<96x128xf32, #tpu.memory_space<vmem>>, vector<8x128xf32>
    %cst_26 = arith.constant dense<0.000000e+00> : vector<8x128xf32>
    %86 = tpu.matmul %81, %13, %cst_26 {dimension_numbers = #tpu.dot_dimension_numbers<[1], [0], [0], [1], [0, 0, 1, 1], [], []>} : vector<8x32xf32>, vector<32x128xf32>, vector<8x128xf32> -> vector<8x128xf32>
    %87 = arith.addf %85, %86 : vector<8x128xf32>
    %88 = arith.negf %87 : vector<8x128xf32>
    %89 = math.exp %88 : vector<8x128xf32>
    %cst_27 = arith.constant 1.000000e+00 : f32
    %90 = vector.broadcast %cst_27 : f32 to vector<8x128xf32>
    %91 = arith.addf %90, %89 : vector<8x128xf32>
    %92 = arith.divf %90, %91 : vector<8x128xf32>
    %93 = math.tanh %87 : vector<8x128xf32>
    %94 = arith.select %12, %93, %92 : vector<8x128xi1>, vector<8x128xf32>
    %95 = vector.extract_strided_slice %94 {offsets = [0, 0], sizes = [8, 32], strides = [1, 1]} : vector<8x128xf32> to vector<8x32xf32>
    %96 = vector.extract_strided_slice %94 {offsets = [0, 32], sizes = [8, 32], strides = [1, 1]} : vector<8x128xf32> to vector<8x32xf32>
    %97 = vector.extract_strided_slice %94 {offsets = [0, 64], sizes = [8, 32], strides = [1, 1]} : vector<8x128xf32> to vector<8x32xf32>
    %98 = vector.extract_strided_slice %94 {offsets = [0, 96], sizes = [8, 32], strides = [1, 1]} : vector<8x128xf32> to vector<8x32xf32>
    %99 = arith.mulf %96, %79 : vector<8x32xf32>
    %100 = arith.mulf %95, %97 : vector<8x32xf32>
    %101 = arith.addf %99, %100 : vector<8x32xf32>
    %102 = math.tanh %101 : vector<8x32xf32>
    %103 = arith.mulf %98, %102 : vector<8x32xf32>
    %c4_i32 = arith.constant 4 : i32
    %c8_i32_28 = arith.constant 8 : i32
    %104 = arith.muli %c4_i32, %c8_i32_28 : i32
    %105 = tpu.assume_multiple %104, 8 : i32
    %106 = arith.index_cast %105 : i32 to index
    %c0_29 = arith.constant 0 : index
    %107 = vector.load %arg9[%106, %c0_29] : memref<96x128xf32, #tpu.memory_space<vmem>>, vector<8x128xf32>
    %cst_30 = arith.constant dense<0.000000e+00> : vector<8x128xf32>
    %108 = tpu.matmul %103, %13, %cst_30 {dimension_numbers = #tpu.dot_dimension_numbers<[1], [0], [0], [1], [0, 0, 1, 1], [], []>} : vector<8x32xf32>, vector<32x128xf32>, vector<8x128xf32> -> vector<8x128xf32>
    %109 = arith.addf %107, %108 : vector<8x128xf32>
    %110 = arith.negf %109 : vector<8x128xf32>
    %111 = math.exp %110 : vector<8x128xf32>
    %cst_31 = arith.constant 1.000000e+00 : f32
    %112 = vector.broadcast %cst_31 : f32 to vector<8x128xf32>
    %113 = arith.addf %112, %111 : vector<8x128xf32>
    %114 = arith.divf %112, %113 : vector<8x128xf32>
    %115 = math.tanh %109 : vector<8x128xf32>
    %116 = arith.select %12, %115, %114 : vector<8x128xi1>, vector<8x128xf32>
    %117 = vector.extract_strided_slice %116 {offsets = [0, 0], sizes = [8, 32], strides = [1, 1]} : vector<8x128xf32> to vector<8x32xf32>
    %118 = vector.extract_strided_slice %116 {offsets = [0, 32], sizes = [8, 32], strides = [1, 1]} : vector<8x128xf32> to vector<8x32xf32>
    %119 = vector.extract_strided_slice %116 {offsets = [0, 64], sizes = [8, 32], strides = [1, 1]} : vector<8x128xf32> to vector<8x32xf32>
    %120 = vector.extract_strided_slice %116 {offsets = [0, 96], sizes = [8, 32], strides = [1, 1]} : vector<8x128xf32> to vector<8x32xf32>
    %121 = arith.mulf %118, %101 : vector<8x32xf32>
    %122 = arith.mulf %117, %119 : vector<8x32xf32>
    %123 = arith.addf %121, %122 : vector<8x32xf32>
    %124 = math.tanh %123 : vector<8x32xf32>
    %125 = arith.mulf %120, %124 : vector<8x32xf32>
    %c5_i32 = arith.constant 5 : i32
    %c8_i32_32 = arith.constant 8 : i32
    %126 = arith.muli %c5_i32, %c8_i32_32 : i32
    %127 = tpu.assume_multiple %126, 8 : i32
    %128 = arith.index_cast %127 : i32 to index
    %c0_33 = arith.constant 0 : index
    %129 = vector.load %arg9[%128, %c0_33] : memref<96x128xf32, #tpu.memory_space<vmem>>, vector<8x128xf32>
    %cst_34 = arith.constant dense<0.000000e+00> : vector<8x128xf32>
    %130 = tpu.matmul %125, %13, %cst_34 {dimension_numbers = #tpu.dot_dimension_numbers<[1], [0], [0], [1], [0, 0, 1, 1], [], []>} : vector<8x32xf32>, vector<32x128xf32>, vector<8x128xf32> -> vector<8x128xf32>
    %131 = arith.addf %129, %130 : vector<8x128xf32>
    %132 = arith.negf %131 : vector<8x128xf32>
    %133 = math.exp %132 : vector<8x128xf32>
    %cst_35 = arith.constant 1.000000e+00 : f32
    %134 = vector.broadcast %cst_35 : f32 to vector<8x128xf32>
    %135 = arith.addf %134, %133 : vector<8x128xf32>
    %136 = arith.divf %134, %135 : vector<8x128xf32>
    %137 = math.tanh %131 : vector<8x128xf32>
    %138 = arith.select %12, %137, %136 : vector<8x128xi1>, vector<8x128xf32>
    %139 = vector.extract_strided_slice %138 {offsets = [0, 0], sizes = [8, 32], strides = [1, 1]} : vector<8x128xf32> to vector<8x32xf32>
    %140 = vector.extract_strided_slice %138 {offsets = [0, 32], sizes = [8, 32], strides = [1, 1]} : vector<8x128xf32> to vector<8x32xf32>
    %141 = vector.extract_strided_slice %138 {offsets = [0, 64], sizes = [8, 32], strides = [1, 1]} : vector<8x128xf32> to vector<8x32xf32>
    %142 = vector.extract_strided_slice %138 {offsets = [0, 96], sizes = [8, 32], strides = [1, 1]} : vector<8x128xf32> to vector<8x32xf32>
    %143 = arith.mulf %140, %123 : vector<8x32xf32>
    %144 = arith.mulf %139, %141 : vector<8x32xf32>
    %145 = arith.addf %143, %144 : vector<8x32xf32>
    %146 = math.tanh %145 : vector<8x32xf32>
    %147 = arith.mulf %142, %146 : vector<8x32xf32>
    %c6_i32 = arith.constant 6 : i32
    %c8_i32_36 = arith.constant 8 : i32
    %148 = arith.muli %c6_i32, %c8_i32_36 : i32
    %149 = tpu.assume_multiple %148, 8 : i32
    %150 = arith.index_cast %149 : i32 to index
    %c0_37 = arith.constant 0 : index
    %151 = vector.load %arg9[%150, %c0_37] : memref<96x128xf32, #tpu.memory_space<vmem>>, vector<8x128xf32>
    %cst_38 = arith.constant dense<0.000000e+00> : vector<8x128xf32>
    %152 = tpu.matmul %147, %13, %cst_38 {dimension_numbers = #tpu.dot_dimension_numbers<[1], [0], [0], [1], [0, 0, 1, 1], [], []>} : vector<8x32xf32>, vector<32x128xf32>, vector<8x128xf32> -> vector<8x128xf32>
    %153 = arith.addf %151, %152 : vector<8x128xf32>
    %154 = arith.negf %153 : vector<8x128xf32>
    %155 = math.exp %154 : vector<8x128xf32>
    %cst_39 = arith.constant 1.000000e+00 : f32
    %156 = vector.broadcast %cst_39 : f32 to vector<8x128xf32>
    %157 = arith.addf %156, %155 : vector<8x128xf32>
    %158 = arith.divf %156, %157 : vector<8x128xf32>
    %159 = math.tanh %153 : vector<8x128xf32>
    %160 = arith.select %12, %159, %158 : vector<8x128xi1>, vector<8x128xf32>
    %161 = vector.extract_strided_slice %160 {offsets = [0, 0], sizes = [8, 32], strides = [1, 1]} : vector<8x128xf32> to vector<8x32xf32>
    %162 = vector.extract_strided_slice %160 {offsets = [0, 32], sizes = [8, 32], strides = [1, 1]} : vector<8x128xf32> to vector<8x32xf32>
    %163 = vector.extract_strided_slice %160 {offsets = [0, 64], sizes = [8, 32], strides = [1, 1]} : vector<8x128xf32> to vector<8x32xf32>
    %164 = vector.extract_strided_slice %160 {offsets = [0, 96], sizes = [8, 32], strides = [1, 1]} : vector<8x128xf32> to vector<8x32xf32>
    %165 = arith.mulf %162, %145 : vector<8x32xf32>
    %166 = arith.mulf %161, %163 : vector<8x32xf32>
    %167 = arith.addf %165, %166 : vector<8x32xf32>
    %168 = math.tanh %167 : vector<8x32xf32>
    %169 = arith.mulf %164, %168 : vector<8x32xf32>
    %c7_i32 = arith.constant 7 : i32
    %c8_i32_40 = arith.constant 8 : i32
    %170 = arith.muli %c7_i32, %c8_i32_40 : i32
    %171 = tpu.assume_multiple %170, 8 : i32
    %172 = arith.index_cast %171 : i32 to index
    %c0_41 = arith.constant 0 : index
    %173 = vector.load %arg9[%172, %c0_41] : memref<96x128xf32, #tpu.memory_space<vmem>>, vector<8x128xf32>
    %cst_42 = arith.constant dense<0.000000e+00> : vector<8x128xf32>
    %174 = tpu.matmul %169, %13, %cst_42 {dimension_numbers = #tpu.dot_dimension_numbers<[1], [0], [0], [1], [0, 0, 1, 1], [], []>} : vector<8x32xf32>, vector<32x128xf32>, vector<8x128xf32> -> vector<8x128xf32>
    %175 = arith.addf %173, %174 : vector<8x128xf32>
    %176 = arith.negf %175 : vector<8x128xf32>
    %177 = math.exp %176 : vector<8x128xf32>
    %cst_43 = arith.constant 1.000000e+00 : f32
    %178 = vector.broadcast %cst_43 : f32 to vector<8x128xf32>
    %179 = arith.addf %178, %177 : vector<8x128xf32>
    %180 = arith.divf %178, %179 : vector<8x128xf32>
    %181 = math.tanh %175 : vector<8x128xf32>
    %182 = arith.select %12, %181, %180 : vector<8x128xi1>, vector<8x128xf32>
    %183 = vector.extract_strided_slice %182 {offsets = [0, 0], sizes = [8, 32], strides = [1, 1]} : vector<8x128xf32> to vector<8x32xf32>
    %184 = vector.extract_strided_slice %182 {offsets = [0, 32], sizes = [8, 32], strides = [1, 1]} : vector<8x128xf32> to vector<8x32xf32>
    %185 = vector.extract_strided_slice %182 {offsets = [0, 64], sizes = [8, 32], strides = [1, 1]} : vector<8x128xf32> to vector<8x32xf32>
    %186 = vector.extract_strided_slice %182 {offsets = [0, 96], sizes = [8, 32], strides = [1, 1]} : vector<8x128xf32> to vector<8x32xf32>
    %187 = arith.mulf %184, %167 : vector<8x32xf32>
    %188 = arith.mulf %183, %185 : vector<8x32xf32>
    %189 = arith.addf %187, %188 : vector<8x32xf32>
    %190 = math.tanh %189 : vector<8x32xf32>
    %191 = arith.mulf %186, %190 : vector<8x32xf32>
    %c8_i32_44 = arith.constant 8 : i32
    %c8_i32_45 = arith.constant 8 : i32
    %192 = arith.muli %c8_i32_44, %c8_i32_45 : i32
    %193 = tpu.assume_multiple %192, 8 : i32
    %194 = arith.index_cast %193 : i32 to index
    %c0_46 = arith.constant 0 : index
    %195 = vector.load %arg9[%194, %c0_46] : memref<96x128xf32, #tpu.memory_space<vmem>>, vector<8x128xf32>
    %cst_47 = arith.constant dense<0.000000e+00> : vector<8x128xf32>
    %196 = tpu.matmul %191, %13, %cst_47 {dimension_numbers = #tpu.dot_dimension_numbers<[1], [0], [0], [1], [0, 0, 1, 1], [], []>} : vector<8x32xf32>, vector<32x128xf32>, vector<8x128xf32> -> vector<8x128xf32>
    %197 = arith.addf %195, %196 : vector<8x128xf32>
    %198 = arith.negf %197 : vector<8x128xf32>
    %199 = math.exp %198 : vector<8x128xf32>
    %cst_48 = arith.constant 1.000000e+00 : f32
    %200 = vector.broadcast %cst_48 : f32 to vector<8x128xf32>
    %201 = arith.addf %200, %199 : vector<8x128xf32>
    %202 = arith.divf %200, %201 : vector<8x128xf32>
    %203 = math.tanh %197 : vector<8x128xf32>
    %204 = arith.select %12, %203, %202 : vector<8x128xi1>, vector<8x128xf32>
    %205 = vector.extract_strided_slice %204 {offsets = [0, 0], sizes = [8, 32], strides = [1, 1]} : vector<8x128xf32> to vector<8x32xf32>
    %206 = vector.extract_strided_slice %204 {offsets = [0, 32], sizes = [8, 32], strides = [1, 1]} : vector<8x128xf32> to vector<8x32xf32>
    %207 = vector.extract_strided_slice %204 {offsets = [0, 64], sizes = [8, 32], strides = [1, 1]} : vector<8x128xf32> to vector<8x32xf32>
    %208 = vector.extract_strided_slice %204 {offsets = [0, 96], sizes = [8, 32], strides = [1, 1]} : vector<8x128xf32> to vector<8x32xf32>
    %209 = arith.mulf %206, %189 : vector<8x32xf32>
    %210 = arith.mulf %205, %207 : vector<8x32xf32>
    %211 = arith.addf %209, %210 : vector<8x32xf32>
    %212 = math.tanh %211 : vector<8x32xf32>
    %213 = arith.mulf %208, %212 : vector<8x32xf32>
    %c9_i32 = arith.constant 9 : i32
    %c8_i32_49 = arith.constant 8 : i32
    %214 = arith.muli %c9_i32, %c8_i32_49 : i32
    %215 = tpu.assume_multiple %214, 8 : i32
    %216 = arith.index_cast %215 : i32 to index
    %c0_50 = arith.constant 0 : index
    %217 = vector.load %arg9[%216, %c0_50] : memref<96x128xf32, #tpu.memory_space<vmem>>, vector<8x128xf32>
    %cst_51 = arith.constant dense<0.000000e+00> : vector<8x128xf32>
    %218 = tpu.matmul %213, %13, %cst_51 {dimension_numbers = #tpu.dot_dimension_numbers<[1], [0], [0], [1], [0, 0, 1, 1], [], []>} : vector<8x32xf32>, vector<32x128xf32>, vector<8x128xf32> -> vector<8x128xf32>
    %219 = arith.addf %217, %218 : vector<8x128xf32>
    %220 = arith.negf %219 : vector<8x128xf32>
    %221 = math.exp %220 : vector<8x128xf32>
    %cst_52 = arith.constant 1.000000e+00 : f32
    %222 = vector.broadcast %cst_52 : f32 to vector<8x128xf32>
    %223 = arith.addf %222, %221 : vector<8x128xf32>
    %224 = arith.divf %222, %223 : vector<8x128xf32>
    %225 = math.tanh %219 : vector<8x128xf32>
    %226 = arith.select %12, %225, %224 : vector<8x128xi1>, vector<8x128xf32>
    %227 = vector.extract_strided_slice %226 {offsets = [0, 0], sizes = [8, 32], strides = [1, 1]} : vector<8x128xf32> to vector<8x32xf32>
    %228 = vector.extract_strided_slice %226 {offsets = [0, 32], sizes = [8, 32], strides = [1, 1]} : vector<8x128xf32> to vector<8x32xf32>
    %229 = vector.extract_strided_slice %226 {offsets = [0, 64], sizes = [8, 32], strides = [1, 1]} : vector<8x128xf32> to vector<8x32xf32>
    %230 = vector.extract_strided_slice %226 {offsets = [0, 96], sizes = [8, 32], strides = [1, 1]} : vector<8x128xf32> to vector<8x32xf32>
    %231 = arith.mulf %228, %211 : vector<8x32xf32>
    %232 = arith.mulf %227, %229 : vector<8x32xf32>
    %233 = arith.addf %231, %232 : vector<8x32xf32>
    %234 = math.tanh %233 : vector<8x32xf32>
    %235 = arith.mulf %230, %234 : vector<8x32xf32>
    %c10_i32 = arith.constant 10 : i32
    %c8_i32_53 = arith.constant 8 : i32
    %236 = arith.muli %c10_i32, %c8_i32_53 : i32
    %237 = tpu.assume_multiple %236, 8 : i32
    %238 = arith.index_cast %237 : i32 to index
    %c0_54 = arith.constant 0 : index
    %239 = vector.load %arg9[%238, %c0_54] : memref<96x128xf32, #tpu.memory_space<vmem>>, vector<8x128xf32>
    %cst_55 = arith.constant dense<0.000000e+00> : vector<8x128xf32>
    %240 = tpu.matmul %235, %13, %cst_55 {dimension_numbers = #tpu.dot_dimension_numbers<[1], [0], [0], [1], [0, 0, 1, 1], [], []>} : vector<8x32xf32>, vector<32x128xf32>, vector<8x128xf32> -> vector<8x128xf32>
    %241 = arith.addf %239, %240 : vector<8x128xf32>
    %242 = arith.negf %241 : vector<8x128xf32>
    %243 = math.exp %242 : vector<8x128xf32>
    %cst_56 = arith.constant 1.000000e+00 : f32
    %244 = vector.broadcast %cst_56 : f32 to vector<8x128xf32>
    %245 = arith.addf %244, %243 : vector<8x128xf32>
    %246 = arith.divf %244, %245 : vector<8x128xf32>
    %247 = math.tanh %241 : vector<8x128xf32>
    %248 = arith.select %12, %247, %246 : vector<8x128xi1>, vector<8x128xf32>
    %249 = vector.extract_strided_slice %248 {offsets = [0, 0], sizes = [8, 32], strides = [1, 1]} : vector<8x128xf32> to vector<8x32xf32>
    %250 = vector.extract_strided_slice %248 {offsets = [0, 32], sizes = [8, 32], strides = [1, 1]} : vector<8x128xf32> to vector<8x32xf32>
    %251 = vector.extract_strided_slice %248 {offsets = [0, 64], sizes = [8, 32], strides = [1, 1]} : vector<8x128xf32> to vector<8x32xf32>
    %252 = vector.extract_strided_slice %248 {offsets = [0, 96], sizes = [8, 32], strides = [1, 1]} : vector<8x128xf32> to vector<8x32xf32>
    %253 = arith.mulf %250, %233 : vector<8x32xf32>
    %254 = arith.mulf %249, %251 : vector<8x32xf32>
    %255 = arith.addf %253, %254 : vector<8x32xf32>
    %256 = math.tanh %255 : vector<8x32xf32>
    %257 = arith.mulf %252, %256 : vector<8x32xf32>
    %c11_i32 = arith.constant 11 : i32
    %c8_i32_57 = arith.constant 8 : i32
    %258 = arith.muli %c11_i32, %c8_i32_57 : i32
    %259 = tpu.assume_multiple %258, 8 : i32
    %260 = arith.index_cast %259 : i32 to index
    %c0_58 = arith.constant 0 : index
    %261 = vector.load %arg9[%260, %c0_58] : memref<96x128xf32, #tpu.memory_space<vmem>>, vector<8x128xf32>
    %cst_59 = arith.constant dense<0.000000e+00> : vector<8x128xf32>
    %262 = tpu.matmul %257, %13, %cst_59 {dimension_numbers = #tpu.dot_dimension_numbers<[1], [0], [0], [1], [0, 0, 1, 1], [], []>} : vector<8x32xf32>, vector<32x128xf32>, vector<8x128xf32> -> vector<8x128xf32>
    %263 = arith.addf %261, %262 : vector<8x128xf32>
    %264 = arith.negf %263 : vector<8x128xf32>
    %265 = math.exp %264 : vector<8x128xf32>
    %cst_60 = arith.constant 1.000000e+00 : f32
    %266 = vector.broadcast %cst_60 : f32 to vector<8x128xf32>
    %267 = arith.addf %266, %265 : vector<8x128xf32>
    %268 = arith.divf %266, %267 : vector<8x128xf32>
    %269 = math.tanh %263 : vector<8x128xf32>
    %270 = arith.select %12, %269, %268 : vector<8x128xi1>, vector<8x128xf32>
    %271 = vector.extract_strided_slice %270 {offsets = [0, 0], sizes = [8, 32], strides = [1, 1]} : vector<8x128xf32> to vector<8x32xf32>
    %272 = vector.extract_strided_slice %270 {offsets = [0, 32], sizes = [8, 32], strides = [1, 1]} : vector<8x128xf32> to vector<8x32xf32>
    %273 = vector.extract_strided_slice %270 {offsets = [0, 64], sizes = [8, 32], strides = [1, 1]} : vector<8x128xf32> to vector<8x32xf32>
    %274 = vector.extract_strided_slice %270 {offsets = [0, 96], sizes = [8, 32], strides = [1, 1]} : vector<8x128xf32> to vector<8x32xf32>
    %275 = arith.mulf %272, %255 : vector<8x32xf32>
    %276 = arith.mulf %271, %273 : vector<8x32xf32>
    %277 = arith.addf %275, %276 : vector<8x32xf32>
    %278 = math.tanh %277 : vector<8x32xf32>
    %279 = arith.mulf %274, %278 : vector<8x32xf32>
    %c12_i32 = arith.constant 12 : i32
    %c0_61 = arith.constant 0 : index
    %c0_62 = arith.constant 0 : index
    %280 = vector.load %arg6[%c0_61, %c0_62] : memref<32x2xf32, #tpu.memory_space<vmem>>, vector<32x2xf32>
    %cst_63 = arith.constant dense<0.000000e+00> : vector<8x2xf32>
    %281 = tpu.matmul %279, %280, %cst_63 {dimension_numbers = #tpu.dot_dimension_numbers<[1], [0], [0], [1], [0, 0, 1, 1], [], []>} : vector<8x32xf32>, vector<32x2xf32>, vector<8x2xf32> -> vector<8x2xf32>
    %c0_64 = arith.constant 0 : index
    %c0_65 = arith.constant 0 : index
    %282 = vector.load %arg7[%c0_64, %c0_65] : memref<1x2xf32, #tpu.memory_space<vmem>>, vector<1x2xf32>
    %283 = vector.broadcast %282 : vector<1x2xf32> to vector<8x2xf32>
    %284 = arith.addf %281, %283 : vector<8x2xf32>
    %cst_66 = arith.constant dense<0xFF800000> : vector<8xf32>
    %285 = vector.multi_reduction <maximumf>, %284, %cst_66 [1] : vector<8x2xf32> to vector<8xf32>
    %286 = vector.shape_cast %285 : vector<8xf32> to vector<8x1xf32>
    %287 = vector.broadcast %286 : vector<8x1xf32> to vector<8x2xf32>
    %288 = arith.subf %284, %287 : vector<8x2xf32>
    %289 = math.exp %288 : vector<8x2xf32>
    %cst_67 = arith.constant dense<0.000000e+00> : vector<8xf32>
    %290 = vector.multi_reduction <add>, %289, %cst_67 [1] : vector<8x2xf32> to vector<8xf32>
    %291 = vector.shape_cast %290 : vector<8xf32> to vector<8x1xf32>
    %292 = math.log %291 : vector<8x1xf32>
    %293 = vector.broadcast %292 : vector<8x1xf32> to vector<8x2xf32>
    %294 = arith.subf %288, %293 : vector<8x2xf32>
    %c0_68 = arith.constant 0 : index
    %c0_69 = arith.constant 0 : index
    %295 = vector.load %arg8[%c0_68, %c0_69] : memref<8x2xf32, #tpu.memory_space<vmem>>, vector<8x2xf32>
    tpu.vector_store %arg8[%c0_68, %c0_69], %294 {strides = array<i32>} : memref<8x2xf32, #tpu.memory_space<vmem>>, vector<8x2xf32>,
    return
  }
}

</mosaic_0001>

<llo_original>
// kernel: tpu_custom_call.1
$region0: #{tpu_custom_call.1}
  #allocation0 [shape = 'u32[]', space=smem, size = 0x4, offset = 0x4, fixed_abs, tag = 'smem constant byte address 0x4 - core index']
  #allocation1 [shape = 'u32[144,128]{1,0:T(1,128)}', space=vmem, size = 0x12000, scoped, tag = 'internal scratch']
  #allocation2 [shape = 'f32[96,128]{1,0:T(8,128)}', space=vmem, size = 0xc000, scoped, tag = 'scratch operand']
  %s0 = inlined_call_operand.vmem [shape: f32[96,64], index: 0, kind: input, shape index: {}]
  %s1 = inlined_call_operand.vmem [shape: f32[64,128], index: 1, kind: input, shape index: {}]
  %s2 = inlined_call_operand.vmem [shape: f32[32,128], index: 2, kind: input, shape index: {}]
  %s3 = inlined_call_operand.vmem [shape: f32[1,128], index: 3, kind: input, shape index: {}]
  %s4 = inlined_call_operand.vmem [shape: f32[8,32], index: 4, kind: input, shape index: {}]
  %s5 = inlined_call_operand.vmem [shape: f32[8,32], index: 5, kind: input, shape index: {}]
  %s6 = inlined_call_operand.vmem [shape: f32[32,2], index: 6, kind: input, shape index: {}]
  %s7 = inlined_call_operand.vmem [shape: f32[1,2], index: 7, kind: input, shape index: {}]
  %s8 = inlined_call_operand.vmem [shape: f32[8,2], index: 8, kind: output, shape index: {}]
  %s9 = sld [smem:[#allocation0]]
  $region42: #{tpu_custom_call.1} parent=0
    _
  %s11 = ssub.s32 1, %s9
  %s12 = scalar_select 0, %s11, %s9
  // Predicated region
  $region2: #{tpu_custom_call.1} parent=0 // pred_check
    _
  $region3: #{tpu_custom_call.1} parent=0 // pred_check_branch
    %14 = sbr.rel (0) target = $region5
  $region4: #{tpu_custom_call.1} parent=0 // pred_region
    _
  $region5: #{tpu_custom_call.1} parent=0 // pred_fallthru
    _
  // Predicated region
  $region6: #{tpu_custom_call.1} parent=0 // pred_check
    _
  $region7: #{tpu_custom_call.1} parent=0 // pred_check_branch
    %16 = sbr.rel (0) target = $region9
  $region8: #{tpu_custom_call.1} parent=0 // pred_region
    _
  $region9: #{tpu_custom_call.1} parent=0 // pred_fallthru
    _
  // Predicated region
  $region10: #{tpu_custom_call.1} parent=0 // pred_check
    _
  $region11: #{tpu_custom_call.1} parent=0 // pred_check_branch
    %18 = sbr.rel (0) target = $region13
  $region12: #{tpu_custom_call.1} parent=0 // pred_region
    _
  $region13: #{tpu_custom_call.1} parent=0 // pred_fallthru
    _
  // Predicated region
  $region14: #{tpu_custom_call.1} parent=0 // pred_check
    _
  $region15: #{tpu_custom_call.1} parent=0 // pred_check_branch
    %20 = sbr.rel (0) target = $region17
  $region16: #{tpu_custom_call.1} parent=0 // pred_region
    _
  $region17: #{tpu_custom_call.1} parent=0 // pred_fallthru
    _
  // Predicated region
  $region18: #{tpu_custom_call.1} parent=0 // pred_check
    _
  $region19: #{tpu_custom_call.1} parent=0 // pred_check_branch
    %22 = sbr.rel (0) target = $region21
  $region20: #{tpu_custom_call.1} parent=0 // pred_region
    _
  $region21: #{tpu_custom_call.1} parent=0 // pred_fallthru
    _
  // Predicated region
  $region22: #{tpu_custom_call.1} parent=0 // pred_check
    _
  $region23: #{tpu_custom_call.1} parent=0 // pred_check_branch
    %24 = sbr.rel (0) target = $region25
  $region24: #{tpu_custom_call.1} parent=0 // pred_region
    _
  $region25: #{tpu_custom_call.1} parent=0 // pred_fallthru
    _
  // Predicated region
  $region26: #{tpu_custom_call.1} parent=0 // pred_check
    _
  $region27: #{tpu_custom_call.1} parent=0 // pred_check_branch
    %26 = sbr.rel (0) target = $region29
  $region28: #{tpu_custom_call.1} parent=0 // pred_region
    _
  $region29: #{tpu_custom_call.1} parent=0 // pred_fallthru
    _
  // Predicated region
  $region30: #{tpu_custom_call.1} parent=0 // pred_check
    _
  $region31: #{tpu_custom_call.1} parent=0 // pred_check_branch
    %28 = sbr.rel (0) target = $region33
  $region32: #{tpu_custom_call.1} parent=0 // pred_region
    _
  $region33: #{tpu_custom_call.1} parent=0 // pred_fallthru
    _
  %v29 = vld [vmem:[%s0] sm:$0xff]
  %v30 = vld [vmem:[%s0 + $0x8] sm:$0xff]
  %v31 = vld [vmem:[%s0 + $0x10] sm:$0xff]
  %v32 = vld [vmem:[%s0 + $0x18] sm:$0xff]
  %v33 = vld [vmem:[%s0 + $0x20] sm:$0xff]
  %v34 = vld [vmem:[%s0 + $0x28] sm:$0xff]
  %v35 = vld [vmem:[%s0 + $0x30] sm:$0xff]
  %v36 = vld [vmem:[%s0 + $0x38] sm:$0xff]
  %v37 = vld [vmem:[%s0 + $0x40] sm:$0xff]
  %v38 = vld [vmem:[%s0 + $0x48] sm:$0xff]
  %v39 = vld [vmem:[%s0 + $0x50] sm:$0xff]
  %v40 = vld [vmem:[%s0 + $0x58] sm:$0xff]
  %v41 = vld [vmem:[%s1] sm:$0xff]
  %v42 = vld [vmem:[%s1 + $0x8] sm:$0xff]
  %v43 = vld [vmem:[%s1 + $0x10] sm:$0xff]
  %v44 = vld [vmem:[%s1 + $0x18] sm:$0xff]
  %v45 = vld [vmem:[%s1 + $0x20] sm:$0xff]
  %v46 = vld [vmem:[%s1 + $0x28] sm:$0xff]
  %v47 = vld [vmem:[%s1 + $0x30] sm:$0xff]
  %v48 = vld [vmem:[%s1 + $0x38] sm:$0xff]
  %v49 = vld [vmem:[%s3] sm:$0x1]
  %v51 = vlaneseq
  %v52 = vshrl.u32 %v51, 7
  %v53 = vsub.s32 0, %v52
  %v54 = vrot.slane %v49, %v53
  %vm56 = vcmask 523264
  %v58 = vsel %vm56, %v29, 0
  %v61 = vsel %vm56, %v30, 0
  %v64 = vsel %vm56, %v31, 0
  %v67 = vsel %vm56, %v32, 0
  %v70 = vsel %vm56, %v33, 0
  %v73 = vsel %vm56, %v34, 0
  %v76 = vsel %vm56, %v35, 0
  %v79 = vsel %vm56, %v36, 0
  %v82 = vsel %vm56, %v37, 0
  %v85 = vsel %vm56, %v38, 0
  %v88 = vsel %vm56, %v39, 0
  %v91 = vsel %vm56, %v40, 0
  %93 = vmatprep.subr.mxu0 0.0
  %94 = vmatpush1.msra.mxu0 %v41
  %95 = vmatprep.subr.mxu0 0.0
  %96 = vmatpush1.msra.mxu0 %v42
  %97 = vmatprep.subr.mxu0 0.0
  %98 = vmatpush1.msra.mxu0 %v43
  %99 = vmatprep.subr.mxu0 0.0
  %100 = vmatpush1.msra.mxu0 %v44
  %101 = vmatprep.subr.mxu0 0.0
  %102 = vmatpush1.msra.mxu0 %v45
  %103 = vmatprep.subr.mxu0 0.0
  %104 = vmatpush1.msra.mxu0 %v46
  %105 = vmatprep.subr.mxu0 0.0
  %106 = vmatpush1.msra.mxu0 %v47
  %107 = vmatprep.subr.mxu0 0.0
  %108 = vmatpush1.msra.mxu0 %v48
  %109 = vmatprep.subr.mxu0 0.0
  %110 = vmatpush1.msra.mxu0 0.0
  %111 = vmatprep.subr.mxu0 0.0
  %112 = vmatpush1.msra.mxu0 0.0
  %113 = vmatprep.subr.mxu0 0.0
  %114 = vmatpush1.msra.mxu0 0.0
  %115 = vmatprep.subr.mxu0 0.0
  %116 = vmatpush1.msra.mxu0 0.0
  %117 = vmatprep.subr.mxu0 0.0
  %118 = vmatpush1.msra.mxu0 0.0
  %119 = vmatprep.subr.mxu0 0.0
  %120 = vmatpush1.msra.mxu0 0.0
  %121 = vmatprep.subr.mxu0 0.0
  %122 = vmatpush1.msra.mxu0 0.0
  %123 = vmatprep.subr.mxu0 0.0
  %124 = vmatpush1.msra.mxu0 0.0
  %125 = vmatprep.subr.mxu0 0.0
  %126 = vmatpush1.msra.mxu0 0.0
  %127 = vmatprep.subr.mxu0 0.0
  %128 = vmatpush1.msra.mxu0 0.0
  %129 = vmatprep.subr.mxu0 0.0
  %130 = vmatpush1.msra.mxu0 0.0
  %131 = vmatprep.subr.mxu0 0.0
  %132 = vmatpush1.msra.mxu0 0.0
  %133 = vmatprep.subr.mxu0 0.0
  %134 = vmatpush1.msra.mxu0 0.0
  %135 = vmatprep.subr.mxu0 0.0
  %136 = vmatpush1.msra.mxu0 0.0
  %137 = vmatprep.subr.mxu0 0.0
  %138 = vmatpush1.msra.mxu0 0.0
  %139 = vmatprep.subr.mxu0 0.0
  %140 = vmatpush1.msra.mxu0 0.0
  %141 = vmatprep.subr.mxu0 0.0
  %142 = vmatpush1.msra.mxu0 0.0
  %143 = vmatprep.subr.mxu0 0.0
  %144 = vmatpush1.msra.mxu0 0.0
  %145 = vmatprep.subr.mxu0 0.0
  %146 = vmatpush1.msra.mxu0 0.0
  %147 = vmatprep.subr.mxu0 0.0
  %148 = vmatpush1.msra.mxu0 0.0
  %149 = vmatprep.subr.mxu0 0.0
  %150 = vmatpush1.msra.mxu0 0.0
  %151 = vmatprep.subr.mxu0 0.0
  %152 = vmatpush1.msra.mxu0 0.0
  %153 = vmatprep.subr.mxu0 0.0
  %154 = vmatpush1.msra.mxu0 0.0
  %155 = vmatprep.subr.mxu0 0.0
  %156 = vmatpush1.msra.mxu0 0.0
  %157 = vmatprep.mubr.f32.mxu0 0.0
  %158 = vmatmul.mubr.f32.gmra.mrb[0].mxu0 %v58
  %v159 = vpop.f32.mrb[0].mxu0
  %v160 = vadd.f32 %v54, %v159
  %v161 = vpop.f32.mrb[0].mxu0
  %162 = vmatprep.mubr.f32.mxu0 0.0
  %163 = vmatmul.mubr.f32.gmra.mrb[0].mxu0 %v61
  %v164 = vpop.f32.mrb[0].mxu0
  %v165 = vadd.f32 %v54, %v164
  %v166 = vpop.f32.mrb[0].mxu0
  %167 = vmatprep.mubr.f32.mxu0 0.0
  %168 = vmatmul.mubr.f32.gmra.mrb[0].mxu0 %v64
  %v169 = vpop.f32.mrb[0].mxu0
  %v170 = vadd.f32 %v54, %v169
  %v171 = vpop.f32.mrb[0].mxu0
  %172 = vmatprep.mubr.f32.mxu0 0.0
  %173 = vmatmul.mubr.f32.gmra.mrb[0].mxu0 %v67
  %v174 = vpop.f32.mrb[0].mxu0
  %v175 = vadd.f32 %v54, %v174
  %v176 = vpop.f32.mrb[0].mxu0
  %177 = vmatprep.mubr.f32.mxu0 0.0
  %178 = vmatmul.mubr.f32.gmra.mrb[0].mxu0 %v70
  %v179 = vpop.f32.mrb[0].mxu0
  %v180 = vadd.f32 %v54, %v179
  %v181 = vpop.f32.mrb[0].mxu0
  %182 = vmatprep.mubr.f32.mxu0 0.0
  %183 = vmatmul.mubr.f32.gmra.mrb[0].mxu0 %v73
  %v184 = vpop.f32.mrb[0].mxu0
  %v185 = vadd.f32 %v54, %v184
  %v186 = vpop.f32.mrb[0].mxu0
  %187 = vmatprep.mubr.f32.mxu0 0.0
  %188 = vmatmul.mubr.f32.gmra.mrb[0].mxu0 %v76
  %v189 = vpop.f32.mrb[0].mxu0
  %v190 = vadd.f32 %v54, %v189
  %v191 = vpop.f32.mrb[0].mxu0
  %192 = vmatprep.mubr.f32.mxu0 0.0
  %193 = vmatmul.mubr.f32.gmra.mrb[0].mxu0 %v79
  %v194 = vpop.f32.mrb[0].mxu0
  %v195 = vadd.f32 %v54, %v194
  %v196 = vpop.f32.mrb[0].mxu0
  %197 = vmatprep.mubr.f32.mxu0 0.0
  %198 = vmatmul.mubr.f32.gmra.mrb[0].mxu0 %v82
  %v199 = vpop.f32.mrb[0].mxu0
  %v200 = vadd.f32 %v54, %v199
  %v201 = vpop.f32.mrb[0].mxu0
  %202 = vmatprep.mubr.f32.mxu0 0.0
  %203 = vmatmul.mubr.f32.gmra.mrb[0].mxu0 %v85
  %v204 = vpop.f32.mrb[0].mxu0
  %v205 = vadd.f32 %v54, %v204
  %v206 = vpop.f32.mrb[0].mxu0
  %207 = vmatprep.mubr.f32.mxu0 0.0
  %208 = vmatmul.mubr.f32.gmra.mrb[0].mxu0 %v88
  %v209 = vpop.f32.mrb[0].mxu0
  %v210 = vadd.f32 %v54, %v209
  %v211 = vpop.f32.mrb[0].mxu0
  %212 = vmatprep.mubr.f32.mxu0 0.0
  %213 = vmatmul.mubr.f32.gmra.mrb[0].mxu0 %v91
  %v214 = vpop.f32.mrb[0].mxu0
  %v215 = vadd.f32 %v54, %v214
  %v216 = vpop.f32.mrb[0].mxu0
  %217 = vdwg.mxu0
  %218 = vst [vmem:[#allocation2] sm:$0xff] %v160
  %219 = vst [vmem:[#allocation2 + $0x8] sm:$0xff] %v165
  %220 = vst [vmem:[#allocation2 + $0x10] sm:$0xff] %v170
  %221 = vst [vmem:[#allocation2 + $0x18] sm:$0xff] %v175
  %222 = vst [vmem:[#allocation2 + $0x20] sm:$0xff] %v180
  %223 = vst [vmem:[#allocation2 + $0x28] sm:$0xff] %v185
  %224 = vst [vmem:[#allocation2 + $0x30] sm:$0xff] %v190
  %225 = vst [vmem:[#allocation2 + $0x38] sm:$0xff] %v195
  %226 = vst [vmem:[#allocation2 + $0x40] sm:$0xff] %v200
  %227 = vst [vmem:[#allocation2 + $0x48] sm:$0xff] %v205
  %228 = vst [vmem:[#allocation2 + $0x50] sm:$0xff] %v210
  %229 = vst [vmem:[#allocation2 + $0x58] sm:$0xff] %v215
  %v230 = vlaneseq
  %v231 = vand.u32 %v230, 127
  %vm232 = vcmp.ge.s32.totalorder %v231, 64
  %vm233 = vcmp.lt.s32.totalorder %v231, 96
  %vm234 = vmand %vm232, %vm233
  %v235 = vld [vmem:[%s2] sm:$0xff]
  %v236 = vld [vmem:[%s2 + $0x8] sm:$0xff]
  %v237 = vld [vmem:[%s2 + $0x10] sm:$0xff]
  %v238 = vld [vmem:[%s2 + $0x18] sm:$0xff]
  %v239 = vld [vmem:[%s4] sm:$0xff]
  %v240 = vld [vmem:[%s5] sm:$0xff]
  %v241 = vld [vmem:[#allocation2] sm:$0xff]
  %vm242 = vcmask 261120
  %v244 = vsel %vm242, %v239, 0
  %246 = vmatprep.subr.mxu0 0.0
  %247 = vmatpush1.msra.mxu0 %v235
  %248 = vmatprep.subr.mxu0 0.0
  %249 = vmatpush1.msra.mxu0 %v236
  %250 = vmatprep.subr.mxu0 0.0
  %251 = vmatpush1.msra.mxu0 %v237
  %252 = vmatprep.subr.mxu0 0.0
  %253 = vmatpush1.msra.mxu0 %v238
  %254 = vmatprep.subr.mxu0 0.0
  %255 = vmatpush1.msra.mxu0 0.0
  %256 = vmatprep.subr.mxu0 0.0
  %257 = vmatpush1.msra.mxu0 0.0
  %258 = vmatprep.subr.mxu0 0.0
  %259 = vmatpush1.msra.mxu0 0.0
  %260 = vmatprep.subr.mxu0 0.0
  %261 = vmatpush1.msra.mxu0 0.0
  %262 = vmatprep.subr.mxu0 0.0
  %263 = vmatpush1.msra.mxu0 0.0
  %264 = vmatprep.subr.mxu0 0.0
  %265 = vmatpush1.msra.mxu0 0.0
  %266 = vmatprep.subr.mxu0 0.0
  %267 = vmatpush1.msra.mxu0 0.0
  %268 = vmatprep.subr.mxu0 0.0
  %269 = vmatpush1.msra.mxu0 0.0
  %270 = vmatprep.subr.mxu0 0.0
  %271 = vmatpush1.msra.mxu0 0.0
  %272 = vmatprep.subr.mxu0 0.0
  %273 = vmatpush1.msra.mxu0 0.0
  %274 = vmatprep.subr.mxu0 0.0
  %275 = vmatpush1.msra.mxu0 0.0
  %276 = vmatprep.subr.mxu0 0.0
  %277 = vmatpush1.msra.mxu0 0.0
  %278 = vmatprep.subr.mxu0 0.0
  %279 = vmatpush1.msra.mxu0 0.0
  %280 = vmatprep.subr.mxu0 0.0
  %281 = vmatpush1.msra.mxu0 0.0
  %282 = vmatprep.subr.mxu0 0.0
  %283 = vmatpush1.msra.mxu0 0.0
  %284 = vmatprep.subr.mxu0 0.0
  %285 = vmatpush1.msra.mxu0 0.0
  %286 = vmatprep.subr.mxu0 0.0
  %287 = vmatpush1.msra.mxu0 0.0
  %288 = vmatprep.subr.mxu0 0.0
  %289 = vmatpush1.msra.mxu0 0.0
  %290 = vmatprep.subr.mxu0 0.0
  %291 = vmatpush1.msra.mxu0 0.0
  %292 = vmatprep.subr.mxu0 0.0
  %293 = vmatpush1.msra.mxu0 0.0
  %294 = vmatprep.subr.mxu0 0.0
  %295 = vmatpush1.msra.mxu0 0.0
  %296 = vmatprep.subr.mxu0 0.0
  %297 = vmatpush1.msra.mxu0 0.0
  %298 = vmatprep.subr.mxu0 0.0
  %299 = vmatpush1.msra.mxu0 0.0
  %300 = vmatprep.subr.mxu0 0.0
  %301 = vmatpush1.msra.mxu0 0.0
  %302 = vmatprep.subr.mxu0 0.0
  %303 = vmatpush1.msra.mxu0 0.0
  %304 = vmatprep.subr.mxu0 0.0
  %305 = vmatpush1.msra.mxu0 0.0
  %306 = vmatprep.subr.mxu0 0.0
  %307 = vmatpush1.msra.mxu0 0.0
  %308 = vmatprep.subr.mxu0 0.0
  %309 = vmatpush1.msra.mxu0 0.0
  %310 = vmatprep.mubr.f32.mxu0 0.0
  %311 = vmatmul.mubr.f32.gmra.mrb[0].mxu0 %v244
  %v312 = vpop.f32.mrb[0].mxu0
  %v313 = vadd.f32 0.0, %v312
  %v314 = vpop.f32.mrb[0].mxu0
  %315 = vdwg.mxu0
  %v316 = vadd.f32 %v241, %v313
  %v317 = vxor.u32 %v316, 2147483648
  %v318 = vmul.f32 %v317, 1.442695
  %v319 = vpow.pop %v318
  %v320 = vadd.f32 %v319, 1.0
  %v321 = vrcp.pop %v320
  %v322 = vmul.f32 1.0, %v321
  %v323 = vtanh.pop %v316
  %v324 = vsel %vm234, %v323, %v322
  %326 = vrot.lane.b32.xlu0 %v240, 32
  %v327 = vpop.permute.xlu0 %326
  %v329 = vmul.f32 %v324, %v327
  %331 = vrot.lane.b32.xlu0 %v324, 64
  %v332 = vpop.permute.xlu0 %331
  %v334 = vmul.f32 %v324, %v332
  %336 = vrot.lane.b32.xlu0 %v334, 32
  %v337 = vpop.permute.xlu0 %336
  %v339 = vadd.f32 %v329, %v337
  %v340 = vtanh.pop %v339
  %342 = vrot.lane.b32.xlu0 %v340, 64
  %v343 = vpop.permute.xlu0 %342
  %v345 = vmul.f32 %v324, %v343
  %s346 = scalar_lea.vmem [#allocation2], 8
  %v347 = vld [vmem:[%s346] sm:$0xff]
  %349 = vrot.lane.b32.xlu0 %v345, 32
  %v350 = vpop.permute.xlu0 %349
  %v351 = vsel %vm242, %v350, 0
  %353 = vmatprep.subr.mxu0 0.0
  %354 = vmatpush1.msra.mxu0 %v235
  %355 = vmatprep.subr.mxu0 0.0
  %356 = vmatpush1.msra.mxu0 %v236
  %357 = vmatprep.subr.mxu0 0.0
  %358 = vmatpush1.msra.mxu0 %v237
  %359 = vmatprep.subr.mxu0 0.0
  %360 = vmatpush1.msra.mxu0 %v238
  %361 = vmatprep.subr.mxu0 0.0
  %362 = vmatpush1.msra.mxu0 0.0
  %363 = vmatprep.subr.mxu0 0.0
  %364 = vmatpush1.msra.mxu0 0.0
  %365 = vmatprep.subr.mxu0 0.0
  %366 = vmatpush1.msra.mxu0 0.0
  %367 = vmatprep.subr.mxu0 0.0
  %368 = vmatpush1.msra.mxu0 0.0
  %369 = vmatprep.subr.mxu0 0.0
  %370 = vmatpush1.msra.mxu0 0.0
  %371 = vmatprep.subr.mxu0 0.0
  %372 = vmatpush1.msra.mxu0 0.0
  %373 = vmatprep.subr.mxu0 0.0
  %374 = vmatpush1.msra.mxu0 0.0
  %375 = vmatprep.subr.mxu0 0.0
  %376 = vmatpush1.msra.mxu0 0.0
  %377 = vmatprep.subr.mxu0 0.0
  %378 = vmatpush1.msra.mxu0 0.0
  %379 = vmatprep.subr.mxu0 0.0
  %380 = vmatpush1.msra.mxu0 0.0
  %381 = vmatprep.subr.mxu0 0.0
  %382 = vmatpush1.msra.mxu0 0.0
  %383 = vmatprep.subr.mxu0 0.0
  %384 = vmatpush1.msra.mxu0 0.0
  %385 = vmatprep.subr.mxu0 0.0
  %386 = vmatpush1.msra.mxu0 0.0
  %387 = vmatprep.subr.mxu0 0.0
  %388 = vmatpush1.msra.mxu0 0.0
  %389 = vmatprep.subr.mxu0 0.0
  %390 = vmatpush1.msra.mxu0 0.0
  %391 = vmatprep.subr.mxu0 0.0
  %392 = vmatpush1.msra.mxu0 0.0
  %393 = vmatprep.subr.mxu0 0.0
  %394 = vmatpush1.msra.mxu0 0.0
  %395 = vmatprep.subr.mxu0 0.0
  %396 = vmatpush1.msra.mxu0 0.0
  %397 = vmatprep.subr.mxu0 0.0
  %398 = vmatpush1.msra.mxu0 0.0
  %399 = vmatprep.subr.mxu0 0.0
  %400 = vmatpush1.msra.mxu0 0.0
  %401 = vmatprep.subr.mxu0 0.0
  %402 = vmatpush1.msra.mxu0 0.0
  %403 = vmatprep.subr.mxu0 0.0
  %404 = vmatpush1.msra.mxu0 0.0
  %405 = vmatprep.subr.mxu0 0.0
  %406 = vmatpush1.msra.mxu0 0.0
  %407 = vmatprep.subr.mxu0 0.0
  %408 = vmatpush1.msra.mxu0 0.0
  %409 = vmatprep.subr.mxu0 0.0
  %410 = vmatpush1.msra.mxu0 0.0
  %411 = vmatprep.subr.mxu0 0.0
  %412 = vmatpush1.msra.mxu0 0.0
  %413 = vmatprep.subr.mxu0 0.0
  %414 = vmatpush1.msra.mxu0 0.0
  %415 = vmatprep.subr.mxu0 0.0
  %416 = vmatpush1.msra.mxu0 0.0
  %417 = vmatprep.mubr.f32.mxu0 0.0
  %418 = vmatmul.mubr.f32.gmra.mrb[0].mxu0 %v351
  %v419 = vpop.f32.mrb[0].mxu0
  %v420 = vadd.f32 0.0, %v419
  %v421 = vpop.f32.mrb[0].mxu0
  %422 = vdwg.mxu0
  %v423 = vadd.f32 %v347, %v420
  %v424 = vxor.u32 %v423, 2147483648
  %v425 = vmul.f32 %v424, 1.442695
  %v426 = vpow.pop %v425
  %v427 = vadd.f32 %v426, 1.0
  %v428 = vrcp.pop %v427
  %v429 = vmul.f32 1.0, %v428
  %v430 = vtanh.pop %v423
  %v431 = vsel %vm234, %v430, %v429
  %v432 = vmul.f32 %v431, %v339
  %434 = vrot.lane.b32.xlu0 %v431, 64
  %v435 = vpop.permute.xlu0 %434
  %v437 = vmul.f32 %v431, %v435
  %439 = vrot.lane.b32.xlu0 %v437, 32
  %v440 = vpop.permute.xlu0 %439
  %v442 = vadd.f32 %v432, %v440
  %v443 = vtanh.pop %v442
  %445 = vrot.lane.b32.xlu0 %v443, 64
  %v446 = vpop.permute.xlu0 %445
  %v448 = vmul.f32 %v431, %v446
  %s449 = scalar_lea.vmem [#allocation2], 16
  %v450 = vld [vmem:[%s449] sm:$0xff]
  %452 = vrot.lane.b32.xlu0 %v448, 32
  %v453 = vpop.permute.xlu0 %452
  %v454 = vsel %vm242, %v453, 0
  %456 = vmatprep.subr.mxu0 0.0
  %457 = vmatpush1.msra.mxu0 %v235
  %458 = vmatprep.subr.mxu0 0.0
  %459 = vmatpush1.msra.mxu0 %v236
  %460 = vmatprep.subr.mxu0 0.0
  %461 = vmatpush1.msra.mxu0 %v237
  %462 = vmatprep.subr.mxu0 0.0
  %463 = vmatpush1.msra.mxu0 %v238
  %464 = vmatprep.subr.mxu0 0.0
  %465 = vmatpush1.msra.mxu0 0.0
  %466 = vmatprep.subr.mxu0 0.0
  %467 = vmatpush1.msra.mxu0 0.0
  %468 = vmatprep.subr.mxu0 0.0
  %469 = vmatpush1.msra.mxu0 0.0
  %470 = vmatprep.subr.mxu0 0.0
  %471 = vmatpush1.msra.mxu0 0.0
  %472 = vmatprep.subr.mxu0 0.0
  %473 = vmatpush1.msra.mxu0 0.0
  %474 = vmatprep.subr.mxu0 0.0
  %475 = vmatpush1.msra.mxu0 0.0
  %476 = vmatprep.subr.mxu0 0.0
  %477 = vmatpush1.msra.mxu0 0.0
  %478 = vmatprep.subr.mxu0 0.0
  %479 = vmatpush1.msra.mxu0 0.0
  %480 = vmatprep.subr.mxu0 0.0
  %481 = vmatpush1.msra.mxu0 0.0
  %482 = vmatprep.subr.mxu0 0.0
  %483 = vmatpush1.msra.mxu0 0.0
  %484 = vmatprep.subr.mxu0 0.0
  %485 = vmatpush1.msra.mxu0 0.0
  %486 = vmatprep.subr.mxu0 0.0
  %487 = vmatpush1.msra.mxu0 0.0
  %488 = vmatprep.subr.mxu0 0.0
  %489 = vmatpush1.msra.mxu0 0.0
  %490 = vmatprep.subr.mxu0 0.0
  %491 = vmatpush1.msra.mxu0 0.0
  %492 = vmatprep.subr.mxu0 0.0
  %493 = vmatpush1.msra.mxu0 0.0
  %494 = vmatprep.subr.mxu0 0.0
  %495 = vmatpush1.msra.mxu0 0.0
  %496 = vmatprep.subr.mxu0 0.0
  %497 = vmatpush1.msra.mxu0 0.0
  %498 = vmatprep.subr.mxu0 0.0
  %499 = vmatpush1.msra.mxu0 0.0
  %500 = vmatprep.subr.mxu0 0.0
  %501 = vmatpush1.msra.mxu0 0.0
  %502 = vmatprep.subr.mxu0 0.0
  %503 = vmatpush1.msra.mxu0 0.0
  %504 = vmatprep.subr.mxu0 0.0
  %505 = vmatpush1.msra.mxu0 0.0
  %506 = vmatprep.subr.mxu0 0.0
  %507 = vmatpush1.msra.mxu0 0.0
  %508 = vmatprep.subr.mxu0 0.0
  %509 = vmatpush1.msra.mxu0 0.0
  %510 = vmatprep.subr.mxu0 0.0
  %511 = vmatpush1.msra.mxu0 0.0
  %512 = vmatprep.subr.mxu0 0.0
  %513 = vmatpush1.msra.mxu0 0.0
  %514 = vmatprep.subr.mxu0 0.0
  %515 = vmatpush1.msra.mxu0 0.0
  %516 = vmatprep.subr.mxu0 0.0
  %517 = vmatpush1.msra.mxu0 0.0
  %518 = vmatprep.subr.mxu0 0.0
  %519 = vmatpush1.msra.mxu0 0.0
  %520 = vmatprep.mubr.f32.mxu0 0.0
  %521 = vmatmul.mubr.f32.gmra.mrb[0].mxu0 %v454
  %v522 = vpop.f32.mrb[0].mxu0
  %v523 = vadd.f32 0.0, %v522
  %v524 = vpop.f32.mrb[0].mxu0
  %525 = vdwg.mxu0
  %v526 = vadd.f32 %v450, %v523
  %v527 = vxor.u32 %v526, 2147483648
  %v528 = vmul.f32 %v527, 1.442695
  %v529 = vpow.pop %v528
  %v530 = vadd.f32 %v529, 1.0
  %v531 = vrcp.pop %v530
  %v532 = vmul.f32 1.0, %v531
  %v533 = vtanh.pop %v526
  %v534 = vsel %vm234, %v533, %v532
  %v535 = vmul.f32 %v534, %v442
  %537 = vrot.lane.b32.xlu0 %v534, 64
  %v538 = vpop.permute.xlu0 %537
  %v540 = vmul.f32 %v534, %v538
  %542 = vrot.lane.b32.xlu0 %v540, 32
  %v543 = vpop.permute.xlu0 %542
  %v545 = vadd.f32 %v535, %v543
  %v546 = vtanh.pop %v545
  %548 = vrot.lane.b32.xlu0 %v546, 64
  %v549 = vpop.permute.xlu0 %548
  %v551 = vmul.f32 %v534, %v549
  %s552 = scalar_lea.vmem [#allocation2], 24
  %v553 = vld [vmem:[%s552] sm:$0xff]
  %555 = vrot.lane.b32.xlu0 %v551, 32
  %v556 = vpop.permute.xlu0 %555
  %v557 = vsel %vm242, %v556, 0
  %559 = vmatprep.subr.mxu0 0.0
  %560 = vmatpush1.msra.mxu0 %v235
  %561 = vmatprep.subr.mxu0 0.0
  %562 = vmatpush1.msra.mxu0 %v236
  %563 = vmatprep.subr.mxu0 0.0
  %564 = vmatpush1.msra.mxu0 %v237
  %565 = vmatprep.subr.mxu0 0.0
  %566 = vmatpush1.msra.mxu0 %v238
  %567 = vmatprep.subr.mxu0 0.0
  %568 = vmatpush1.msra.mxu0 0.0
  %569 = vmatprep.subr.mxu0 0.0
  %570 = vmatpush1.msra.mxu0 0.0
  %571 = vmatprep.subr.mxu0 0.0
  %572 = vmatpush1.msra.mxu0 0.0
  %573 = vmatprep.subr.mxu0 0.0
  %574 = vmatpush1.msra.mxu0 0.0
  %575 = vmatprep.subr.mxu0 0.0
  %576 = vmatpush1.msra.mxu0 0.0
  %577 = vmatprep.subr.mxu0 0.0
  %578 = vmatpush1.msra.mxu0 0.0
  %579 = vmatprep.subr.mxu0 0.0
  %580 = vmatpush1.msra.mxu0 0.0
  %581 = vmatprep.subr.mxu0 0.0
  %582 = vmatpush1.msra.mxu0 0.0
  %583 = vmatprep.subr.mxu0 0.0
  %584 = vmatpush1.msra.mxu0 0.0
  %585 = vmatprep.subr.mxu0 0.0
  %586 = vmatpush1.msra.mxu0 0.0
  %587 = vmatprep.subr.mxu0 0.0
  %588 = vmatpush1.msra.mxu0 0.0
  %589 = vmatprep.subr.mxu0 0.0
  %590 = vmatpush1.msra.mxu0 0.0
  %591 = vmatprep.subr.mxu0 0.0
  %592 = vmatpush1.msra.mxu0 0.0
  %593 = vmatprep.subr.mxu0 0.0
  %594 = vmatpush1.msra.mxu0 0.0
  %595 = vmatprep.subr.mxu0 0.0
  %596 = vmatpush1.msra.mxu0 0.0
  %597 = vmatprep.subr.mxu0 0.0
  %598 = vmatpush1.msra.mxu0 0.0
  %599 = vmatprep.subr.mxu0 0.0
  %600 = vmatpush1.msra.mxu0 0.0
  %601 = vmatprep.subr.mxu0 0.0
  %602 = vmatpush1.msra.mxu0 0.0
  %603 = vmatprep.subr.mxu0 0.0
  %604 = vmatpush1.msra.mxu0 0.0
  %605 = vmatprep.subr.mxu0 0.0
  %606 = vmatpush1.msra.mxu0 0.0
  %607 = vmatprep.subr.mxu0 0.0
  %608 = vmatpush1.msra.mxu0 0.0
  %609 = vmatprep.subr.mxu0 0.0
  %610 = vmatpush1.msra.mxu0 0.0
  %611 = vmatprep.subr.mxu0 0.0
  %612 = vmatpush1.msra.mxu0 0.0
  %613 = vmatprep.subr.mxu0 0.0
  %614 = vmatpush1.msra.mxu0 0.0
  %615 = vmatprep.subr.mxu0 0.0
  %616 = vmatpush1.msra.mxu0 0.0
  %617 = vmatprep.subr.mxu0 0.0
  %618 = vmatpush1.msra.mxu0 0.0
  %619 = vmatprep.subr.mxu0 0.0
  %620 = vmatpush1.msra.mxu0 0.0
  %621 = vmatprep.subr.mxu0 0.0
  %622 = vmatpush1.msra.mxu0 0.0
  %623 = vmatprep.mubr.f32.mxu0 0.0
  %624 = vmatmul.mubr.f32.gmra.mrb[0].mxu0 %v557
  %v625 = vpop.f32.mrb[0].mxu0
  %v626 = vadd.f32 0.0, %v625
  %v627 = vpop.f32.mrb[0].mxu0
  %628 = vdwg.mxu0
  %v629 = vadd.f32 %v553, %v626
  %v630 = vxor.u32 %v629, 2147483648
  %v631 = vmul.f32 %v630, 1.442695
  %v632 = vpow.pop %v631
  %v633 = vadd.f32 %v632, 1.0
  %v634 = vrcp.pop %v633
  %v635 = vmul.f32 1.0, %v634
  %v636 = vtanh.pop %v629
  %v637 = vsel %vm234, %v636, %v635
  %v638 = vmul.f32 %v637, %v545
  %640 = vrot.lane.b32.xlu0 %v637, 64
  %v641 = vpop.permute.xlu0 %640
  %v643 = vmul.f32 %v637, %v641
  %645 = vrot.lane.b32.xlu0 %v643, 32
  %v646 = vpop.permute.xlu0 %645
  %v648 = vadd.f32 %v638, %v646
  %v649 = vtanh.pop %v648
  %651 = vrot.lane.b32.xlu0 %v649, 64
  %v652 = vpop.permute.xlu0 %651
  %v654 = vmul.f32 %v637, %v652
  %s655 = scalar_lea.vmem [#allocation2], 32
  %v656 = vld [vmem:[%s655] sm:$0xff]
  %658 = vrot.lane.b32.xlu0 %v654, 32
  %v659 = vpop.permute.xlu0 %658
  %v660 = vsel %vm242, %v659, 0
  %662 = vmatprep.subr.mxu0 0.0
  %663 = vmatpush1.msra.mxu0 %v235
  %664 = vmatprep.subr.mxu0 0.0
  %665 = vmatpush1.msra.mxu0 %v236
  %666 = vmatprep.subr.mxu0 0.0
  %667 = vmatpush1.msra.mxu0 %v237
  %668 = vmatprep.subr.mxu0 0.0
  %669 = vmatpush1.msra.mxu0 %v238
  %670 = vmatprep.subr.mxu0 0.0
  %671 = vmatpush1.msra.mxu0 0.0
  %672 = vmatprep.subr.mxu0 0.0
  %673 = vmatpush1.msra.mxu0 0.0
  %674 = vmatprep.subr.mxu0 0.0
  %675 = vmatpush1.msra.mxu0 0.0
  %676 = vmatprep.subr.mxu0 0.0
  %677 = vmatpush1.msra.mxu0 0.0
  %678 = vmatprep.subr.mxu0 0.0
  %679 = vmatpush1.msra.mxu0 0.0
  %680 = vmatprep.subr.mxu0 0.0
  %681 = vmatpush1.msra.mxu0 0.0
  %682 = vmatprep.subr.mxu0 0.0
  %683 = vmatpush1.msra.mxu0 0.0
  %684 = vmatprep.subr.mxu0 0.0
  %685 = vmatpush1.msra.mxu0 0.0
  %686 = vmatprep.subr.mxu0 0.0
  %687 = vmatpush1.msra.mxu0 0.0
  %688 = vmatprep.subr.mxu0 0.0
  %689 = vmatpush1.msra.mxu0 0.0
  %690 = vmatprep.subr.mxu0 0.0
  %691 = vmatpush1.msra.mxu0 0.0
  %692 = vmatprep.subr.mxu0 0.0
  %693 = vmatpush1.msra.mxu0 0.0
  %694 = vmatprep.subr.mxu0 0.0
  %695 = vmatpush1.msra.mxu0 0.0
  %696 = vmatprep.subr.mxu0 0.0
  %697 = vmatpush1.msra.mxu0 0.0
  %698 = vmatprep.subr.mxu0 0.0
  %699 = vmatpush1.msra.mxu0 0.0
  %700 = vmatprep.subr.mxu0 0.0
  %701 = vmatpush1.msra.mxu0 0.0
  %702 = vmatprep.subr.mxu0 0.0
  %703 = vmatpush1.msra.mxu0 0.0
  %704 = vmatprep.subr.mxu0 0.0
  %705 = vmatpush1.msra.mxu0 0.0
  %706 = vmatprep.subr.mxu0 0.0
  %707 = vmatpush1.msra.mxu0 0.0
  %708 = vmatprep.subr.mxu0 0.0
  %709 = vmatpush1.msra.mxu0 0.0
  %710 = vmatprep.subr.mxu0 0.0
  %711 = vmatpush1.msra.mxu0 0.0
  %712 = vmatprep.subr.mxu0 0.0
  %713 = vmatpush1.msra.mxu0 0.0
  %714 = vmatprep.subr.mxu0 0.0
  %715 = vmatpush1.msra.mxu0 0.0
  %716 = vmatprep.subr.mxu0 0.0
  %717 = vmatpush1.msra.mxu0 0.0
  %718 = vmatprep.subr.mxu0 0.0
  %719 = vmatpush1.msra.mxu0 0.0
  %720 = vmatprep.subr.mxu0 0.0
  %721 = vmatpush1.msra.mxu0 0.0
  %722 = vmatprep.subr.mxu0 0.0
  %723 = vmatpush1.msra.mxu0 0.0
  %724 = vmatprep.subr.mxu0 0.0
  %725 = vmatpush1.msra.mxu0 0.0
  %726 = vmatprep.mubr.f32.mxu0 0.0
  %727 = vmatmul.mubr.f32.gmra.mrb[0].mxu0 %v660
  %v728 = vpop.f32.mrb[0].mxu0
  %v729 = vadd.f32 0.0, %v728
  %v730 = vpop.f32.mrb[0].mxu0
  %731 = vdwg.mxu0
  %v732 = vadd.f32 %v656, %v729
  %v733 = vxor.u32 %v732, 2147483648
  %v734 = vmul.f32 %v733, 1.442695
  %v735 = vpow.pop %v734
  %v736 = vadd.f32 %v735, 1.0
  %v737 = vrcp.pop %v736
  %v738 = vmul.f32 1.0, %v737
  %v739 = vtanh.pop %v732
  %v740 = vsel %vm234, %v739, %v738
  %v741 = vmul.f32 %v740, %v648
  %743 = vrot.lane.b32.xlu0 %v740, 64
  %v744 = vpop.permute.xlu0 %743
  %v746 = vmul.f32 %v740, %v744
  %748 = vrot.lane.b32.xlu0 %v746, 32
  %v749 = vpop.permute.xlu0 %748
  %v751 = vadd.f32 %v741, %v749
  %v752 = vtanh.pop %v751
  %754 = vrot.lane.b32.xlu0 %v752, 64
  %v755 = vpop.permute.xlu0 %754
  %v757 = vmul.f32 %v740, %v755
  %s758 = scalar_lea.vmem [#allocation2], 40
  %v759 = vld [vmem:[%s758] sm:$0xff]
  %761 = vrot.lane.b32.xlu0 %v757, 32
  %v762 = vpop.permute.xlu0 %761
  %v763 = vsel %vm242, %v762, 0
  %765 = vmatprep.subr.mxu0 0.0
  %766 = vmatpush1.msra.mxu0 %v235
  %767 = vmatprep.subr.mxu0 0.0
  %768 = vmatpush1.msra.mxu0 %v236
  %769 = vmatprep.subr.mxu0 0.0
  %770 = vmatpush1.msra.mxu0 %v237
  %771 = vmatprep.subr.mxu0 0.0
  %772 = vmatpush1.msra.mxu0 %v238
  %773 = vmatprep.subr.mxu0 0.0
  %774 = vmatpush1.msra.mxu0 0.0
  %775 = vmatprep.subr.mxu0 0.0
  %776 = vmatpush1.msra.mxu0 0.0
  %777 = vmatprep.subr.mxu0 0.0
  %778 = vmatpush1.msra.mxu0 0.0
  %779 = vmatprep.subr.mxu0 0.0
  %780 = vmatpush1.msra.mxu0 0.0
  %781 = vmatprep.subr.mxu0 0.0
  %782 = vmatpush1.msra.mxu0 0.0
  %783 = vmatprep.subr.mxu0 0.0
  %784 = vmatpush1.msra.mxu0 0.0
  %785 = vmatprep.subr.mxu0 0.0
  %786 = vmatpush1.msra.mxu0 0.0
  %787 = vmatprep.subr.mxu0 0.0
  %788 = vmatpush1.msra.mxu0 0.0
  %789 = vmatprep.subr.mxu0 0.0
  %790 = vmatpush1.msra.mxu0 0.0
  %791 = vmatprep.subr.mxu0 0.0
  %792 = vmatpush1.msra.mxu0 0.0
  %793 = vmatprep.subr.mxu0 0.0
  %794 = vmatpush1.msra.mxu0 0.0
  %795 = vmatprep.subr.mxu0 0.0
  %796 = vmatpush1.msra.mxu0 0.0
  %797 = vmatprep.subr.mxu0 0.0
  %798 = vmatpush1.msra.mxu0 0.0
  %799 = vmatprep.subr.mxu0 0.0
  %800 = vmatpush1.msra.mxu0 0.0
  %801 = vmatprep.subr.mxu0 0.0
  %802 = vmatpush1.msra.mxu0 0.0
  %803 = vmatprep.subr.mxu0 0.0
  %804 = vmatpush1.msra.mxu0 0.0
  %805 = vmatprep.subr.mxu0 0.0
  %806 = vmatpush1.msra.mxu0 0.0
  %807 = vmatprep.subr.mxu0 0.0
  %808 = vmatpush1.msra.mxu0 0.0
  %809 = vmatprep.subr.mxu0 0.0
  %810 = vmatpush1.msra.mxu0 0.0
  %811 = vmatprep.subr.mxu0 0.0
  %812 = vmatpush1.msra.mxu0 0.0
  %813 = vmatprep.subr.mxu0 0.0
  %814 = vmatpush1.msra.mxu0 0.0
  %815 = vmatprep.subr.mxu0 0.0
  %816 = vmatpush1.msra.mxu0 0.0
  %817 = vmatprep.subr.mxu0 0.0
  %818 = vmatpush1.msra.mxu0 0.0
  %819 = vmatprep.subr.mxu0 0.0
  %820 = vmatpush1.msra.mxu0 0.0
  %821 = vmatprep.subr.mxu0 0.0
  %822 = vmatpush1.msra.mxu0 0.0
  %823 = vmatprep.subr.mxu0 0.0
  %824 = vmatpush1.msra.mxu0 0.0
  %825 = vmatprep.subr.mxu0 0.0
  %826 = vmatpush1.msra.mxu0 0.0
  %827 = vmatprep.subr.mxu0 0.0
  %828 = vmatpush1.msra.mxu0 0.0
  %829 = vmatprep.mubr.f32.mxu0 0.0
  %830 = vmatmul.mubr.f32.gmra.mrb[0].mxu0 %v763
  %v831 = vpop.f32.mrb[0].mxu0
  %v832 = vadd.f32 0.0, %v831
  %v833 = vpop.f32.mrb[0].mxu0
  %834 = vdwg.mxu0
  %v835 = vadd.f32 %v759, %v832
  %v836 = vxor.u32 %v835, 2147483648
  %v837 = vmul.f32 %v836, 1.442695
  %v838 = vpow.pop %v837
  %v839 = vadd.f32 %v838, 1.0
  %v840 = vrcp.pop %v839
  %v841 = vmul.f32 1.0, %v840
  %v842 = vtanh.pop %v835
  %v843 = vsel %vm234, %v842, %v841
  %v844 = vmul.f32 %v843, %v751
  %846 = vrot.lane.b32.xlu0 %v843, 64
  %v847 = vpop.permute.xlu0 %846
  %v849 = vmul.f32 %v843, %v847
  %851 = vrot.lane.b32.xlu0 %v849, 32
  %v852 = vpop.permute.xlu0 %851
  %v854 = vadd.f32 %v844, %v852
  %v855 = vtanh.pop %v854
  %857 = vrot.lane.b32.xlu0 %v855, 64
  %v858 = vpop.permute.xlu0 %857
  %v860 = vmul.f32 %v843, %v858
  %s861 = scalar_lea.vmem [#allocation2], 48
  %v862 = vld [vmem:[%s861] sm:$0xff]
  %864 = vrot.lane.b32.xlu0 %v860, 32
  %v865 = vpop.permute.xlu0 %864
  %v866 = vsel %vm242, %v865, 0
  %868 = vmatprep.subr.mxu0 0.0
  %869 = vmatpush1.msra.mxu0 %v235
  %870 = vmatprep.subr.mxu0 0.0
  %871 = vmatpush1.msra.mxu0 %v236
  %872 = vmatprep.subr.mxu0 0.0
  %873 = vmatpush1.msra.mxu0 %v237
  %874 = vmatprep.subr.mxu0 0.0
  %875 = vmatpush1.msra.mxu0 %v238
  %876 = vmatprep.subr.mxu0 0.0
  %877 = vmatpush1.msra.mxu0 0.0
  %878 = vmatprep.subr.mxu0 0.0
  %879 = vmatpush1.msra.mxu0 0.0
  %880 = vmatprep.subr.mxu0 0.0
  %881 = vmatpush1.msra.mxu0 0.0
  %882 = vmatprep.subr.mxu0 0.0
  %883 = vmatpush1.msra.mxu0 0.0
  %884 = vmatprep.subr.mxu0 0.0
  %885 = vmatpush1.msra.mxu0 0.0
  %886 = vmatprep.subr.mxu0 0.0
  %887 = vmatpush1.msra.mxu0 0.0
  %888 = vmatprep.subr.mxu0 0.0
  %889 = vmatpush1.msra.mxu0 0.0
  %890 = vmatprep.subr.mxu0 0.0
  %891 = vmatpush1.msra.mxu0 0.0
  %892 = vmatprep.subr.mxu0 0.0
  %893 = vmatpush1.msra.mxu0 0.0
  %894 = vmatprep.subr.mxu0 0.0
  %895 = vmatpush1.msra.mxu0 0.0
  %896 = vmatprep.subr.mxu0 0.0
  %897 = vmatpush1.msra.mxu0 0.0
  %898 = vmatprep.subr.mxu0 0.0
  %899 = vmatpush1.msra.mxu0 0.0
  %900 = vmatprep.subr.mxu0 0.0
  %901 = vmatpush1.msra.mxu0 0.0
  %902 = vmatprep.subr.mxu0 0.0
  %903 = vmatpush1.msra.mxu0 0.0
  %904 = vmatprep.subr.mxu0 0.0
  %905 = vmatpush1.msra.mxu0 0.0
  %906 = vmatprep.subr.mxu0 0.0
  %907 = vmatpush1.msra.mxu0 0.0
  %908 = vmatprep.subr.mxu0 0.0
  %909 = vmatpush1.msra.mxu0 0.0
  %910 = vmatprep.subr.mxu0 0.0
  %911 = vmatpush1.msra.mxu0 0.0
  %912 = vmatprep.subr.mxu0 0.0
  %913 = vmatpush1.msra.mxu0 0.0
  %914 = vmatprep.subr.mxu0 0.0
  %915 = vmatpush1.msra.mxu0 0.0
  %916 = vmatprep.subr.mxu0 0.0
  %917 = vmatpush1.msra.mxu0 0.0
  %918 = vmatprep.subr.mxu0 0.0
  %919 = vmatpush1.msra.mxu0 0.0
  %920 = vmatprep.subr.mxu0 0.0
  %921 = vmatpush1.msra.mxu0 0.0
  %922 = vmatprep.subr.mxu0 0.0
  %923 = vmatpush1.msra.mxu0 0.0
  %924 = vmatprep.subr.mxu0 0.0
  %925 = vmatpush1.msra.mxu0 0.0
  %926 = vmatprep.subr.mxu0 0.0
  %927 = vmatpush1.msra.mxu0 0.0
  %928 = vmatprep.subr.mxu0 0.0
  %929 = vmatpush1.msra.mxu0 0.0
  %930 = vmatprep.subr.mxu0 0.0
  %931 = vmatpush1.msra.mxu0 0.0
  %932 = vmatprep.mubr.f32.mxu0 0.0
  %933 = vmatmul.mubr.f32.gmra.mrb[0].mxu0 %v866
  %v934 = vpop.f32.mrb[0].mxu0
  %v935 = vadd.f32 0.0, %v934
  %v936 = vpop.f32.mrb[0].mxu0
  %937 = vdwg.mxu0
  %v938 = vadd.f32 %v862, %v935
  %v939 = vxor.u32 %v938, 2147483648
  %v940 = vmul.f32 %v939, 1.442695
  %v941 = vpow.pop %v940
  %v942 = vadd.f32 %v941, 1.0
  %v943 = vrcp.pop %v942
  %v944 = vmul.f32 1.0, %v943
  %v945 = vtanh.pop %v938
  %v946 = vsel %vm234, %v945, %v944
  %v947 = vmul.f32 %v946, %v854
  %949 = vrot.lane.b32.xlu0 %v946, 64
  %v950 = vpop.permute.xlu0 %949
  %v952 = vmul.f32 %v946, %v950
  %954 = vrot.lane.b32.xlu0 %v952, 32
  %v955 = vpop.permute.xlu0 %954
  %v957 = vadd.f32 %v947, %v955
  %v958 = vtanh.pop %v957
  %960 = vrot.lane.b32.xlu0 %v958, 64
  %v961 = vpop.permute.xlu0 %960
  %v963 = vmul.f32 %v946, %v961
  %s964 = scalar_lea.vmem [#allocation2], 56
  %v965 = vld [vmem:[%s964] sm:$0xff]
  %967 = vrot.lane.b32.xlu0 %v963, 32
  %v968 = vpop.permute.xlu0 %967
  %v969 = vsel %vm242, %v968, 0
  %971 = vmatprep.subr.mxu0 0.0
  %972 = vmatpush1.msra.mxu0 %v235
  %973 = vmatprep.subr.mxu0 0.0
  %974 = vmatpush1.msra.mxu0 %v236
  %975 = vmatprep.subr.mxu0 0.0
  %976 = vmatpush1.msra.mxu0 %v237
  %977 = vmatprep.subr.mxu0 0.0
  %978 = vmatpush1.msra.mxu0 %v238
  %979 = vmatprep.subr.mxu0 0.0
  %980 = vmatpush1.msra.mxu0 0.0
  %981 = vmatprep.subr.mxu0 0.0
  %982 = vmatpush1.msra.mxu0 0.0
  %983 = vmatprep.subr.mxu0 0.0
  %984 = vmatpush1.msra.mxu0 0.0
  %985 = vmatprep.subr.mxu0 0.0
  %986 = vmatpush1.msra.mxu0 0.0
  %987 = vmatprep.subr.mxu0 0.0
  %988 = vmatpush1.msra.mxu0 0.0
  %989 = vmatprep.subr.mxu0 0.0
  %990 = vmatpush1.msra.mxu0 0.0
  %991 = vmatprep.subr.mxu0 0.0
  %992 = vmatpush1.msra.mxu0 0.0
  %993 = vmatprep.subr.mxu0 0.0
  %994 = vmatpush1.msra.mxu0 0.0
  %995 = vmatprep.subr.mxu0 0.0
  %996 = vmatpush1.msra.mxu0 0.0
  %997 = vmatprep.subr.mxu0 0.0
  %998 = vmatpush1.msra.mxu0 0.0
  %999 = vmatprep.subr.mxu0 0.0
  %1000 = vmatpush1.msra.mxu0 0.0
  %1001 = vmatprep.subr.mxu0 0.0
  %1002 = vmatpush1.msra.mxu0 0.0
  %1003 = vmatprep.subr.mxu0 0.0
  %1004 = vmatpush1.msra.mxu0 0.0
  %1005 = vmatprep.subr.mxu0 0.0
  %1006 = vmatpush1.msra.mxu0 0.0
  %1007 = vmatprep.subr.mxu0 0.0
  %1008 = vmatpush1.msra.mxu0 0.0
  %1009 = vmatprep.subr.mxu0 0.0
  %1010 = vmatpush1.msra.mxu0 0.0
  %1011 = vmatprep.subr.mxu0 0.0
  %1012 = vmatpush1.msra.mxu0 0.0
  %1013 = vmatprep.subr.mxu0 0.0
  %1014 = vmatpush1.msra.mxu0 0.0
  %1015 = vmatprep.subr.mxu0 0.0
  %1016 = vmatpush1.msra.mxu0 0.0
  %1017 = vmatprep.subr.mxu0 0.0
  %1018 = vmatpush1.msra.mxu0 0.0
  %1019 = vmatprep.subr.mxu0 0.0
  %1020 = vmatpush1.msra.mxu0 0.0
  %1021 = vmatprep.subr.mxu0 0.0
  %1022 = vmatpush1.msra.mxu0 0.0
  %1023 = vmatprep.subr.mxu0 0.0
  %1024 = vmatpush1.msra.mxu0 0.0
  %1025 = vmatprep.subr.mxu0 0.0
  %1026 = vmatpush1.msra.mxu0 0.0
  %1027 = vmatprep.subr.mxu0 0.0
  %1028 = vmatpush1.msra.mxu0 0.0
  %1029 = vmatprep.subr.mxu0 0.0
  %1030 = vmatpush1.msra.mxu0 0.0
  %1031 = vmatprep.subr.mxu0 0.0
  %1032 = vmatpush1.msra.mxu0 0.0
  %1033 = vmatprep.subr.mxu0 0.0
  %1034 = vmatpush1.msra.mxu0 0.0
  %1035 = vmatprep.mubr.f32.mxu0 0.0
  %1036 = vmatmul.mubr.f32.gmra.mrb[0].mxu0 %v969
  %v1037 = vpop.f32.mrb[0].mxu0
  %v1038 = vadd.f32 0.0, %v1037
  %v1039 = vpop.f32.mrb[0].mxu0
  %1040 = vdwg.mxu0
  %v1041 = vadd.f32 %v965, %v1038
  %v1042 = vxor.u32 %v1041, 2147483648
  %v1043 = vmul.f32 %v1042, 1.442695
  %v1044 = vpow.pop %v1043
  %v1045 = vadd.f32 %v1044, 1.0
  %v1046 = vrcp.pop %v1045
  %v1047 = vmul.f32 1.0, %v1046
  %v1048 = vtanh.pop %v1041
  %v1049 = vsel %vm234, %v1048, %v1047
  %v1050 = vmul.f32 %v1049, %v957
  %1052 = vrot.lane.b32.xlu0 %v1049, 64
  %v1053 = vpop.permute.xlu0 %1052
  %v1055 = vmul.f32 %v1049, %v1053
  %1057 = vrot.lane.b32.xlu0 %v1055, 32
  %v1058 = vpop.permute.xlu0 %1057
  %v1060 = vadd.f32 %v1050, %v1058
  %v1061 = vtanh.pop %v1060
  %1063 = vrot.lane.b32.xlu0 %v1061, 64
  %v1064 = vpop.permute.xlu0 %1063
  %v1066 = vmul.f32 %v1049, %v1064
  %s1067 = scalar_lea.vmem [#allocation2], 64
  %v1068 = vld [vmem:[%s1067] sm:$0xff]
  %1070 = vrot.lane.b32.xlu0 %v1066, 32
  %v1071 = vpop.permute.xlu0 %1070
  %v1072 = vsel %vm242, %v1071, 0
  %1074 = vmatprep.subr.mxu0 0.0
  %1075 = vmatpush1.msra.mxu0 %v235
  %1076 = vmatprep.subr.mxu0 0.0
  %1077 = vmatpush1.msra.mxu0 %v236
  %1078 = vmatprep.subr.mxu0 0.0
  %1079 = vmatpush1.msra.mxu0 %v237
  %1080 = vmatprep.subr.mxu0 0.0
  %1081 = vmatpush1.msra.mxu0 %v238
  %1082 = vmatprep.subr.mxu0 0.0
  %1083 = vmatpush1.msra.mxu0 0.0
  %1084 = vmatprep.subr.mxu0 0.0
  %1085 = vmatpush1.msra.mxu0 0.0
  %1086 = vmatprep.subr.mxu0 0.0
  %1087 = vmatpush1.msra.mxu0 0.0
  %1088 = vmatprep.subr.mxu0 0.0
  %1089 = vmatpush1.msra.mxu0 0.0
  %1090 = vmatprep.subr.mxu0 0.0
  %1091 = vmatpush1.msra.mxu0 0.0
  %1092 = vmatprep.subr.mxu0 0.0
  %1093 = vmatpush1.msra.mxu0 0.0
  %1094 = vmatprep.subr.mxu0 0.0
  %1095 = vmatpush1.msra.mxu0 0.0
  %1096 = vmatprep.subr.mxu0 0.0
  %1097 = vmatpush1.msra.mxu0 0.0
  %1098 = vmatprep.subr.mxu0 0.0
  %1099 = vmatpush1.msra.mxu0 0.0
  %1100 = vmatprep.subr.mxu0 0.0
  %1101 = vmatpush1.msra.mxu0 0.0
  %1102 = vmatprep.subr.mxu0 0.0
  %1103 = vmatpush1.msra.mxu0 0.0
  %1104 = vmatprep.subr.mxu0 0.0
  %1105 = vmatpush1.msra.mxu0 0.0
  %1106 = vmatprep.subr.mxu0 0.0
  %1107 = vmatpush1.msra.mxu0 0.0
  %1108 = vmatprep.subr.mxu0 0.0
  %1109 = vmatpush1.msra.mxu0 0.0
  %1110 = vmatprep.subr.mxu0 0.0
  %1111 = vmatpush1.msra.mxu0 0.0
  %1112 = vmatprep.subr.mxu0 0.0
  %1113 = vmatpush1.msra.mxu0 0.0
  %1114 = vmatprep.subr.mxu0 0.0
  %1115 = vmatpush1.msra.mxu0 0.0
  %1116 = vmatprep.subr.mxu0 0.0
  %1117 = vmatpush1.msra.mxu0 0.0
  %1118 = vmatprep.subr.mxu0 0.0
  %1119 = vmatpush1.msra.mxu0 0.0
  %1120 = vmatprep.subr.mxu0 0.0
  %1121 = vmatpush1.msra.mxu0 0.0
  %1122 = vmatprep.subr.mxu0 0.0
  %1123 = vmatpush1.msra.mxu0 0.0
  %1124 = vmatprep.subr.mxu0 0.0
  %1125 = vmatpush1.msra.mxu0 0.0
  %1126 = vmatprep.subr.mxu0 0.0
  %1127 = vmatpush1.msra.mxu0 0.0
  %1128 = vmatprep.subr.mxu0 0.0
  %1129 = vmatpush1.msra.mxu0 0.0
  %1130 = vmatprep.subr.mxu0 0.0
  %1131 = vmatpush1.msra.mxu0 0.0
  %1132 = vmatprep.subr.mxu0 0.0
  %1133 = vmatpush1.msra.mxu0 0.0
  %1134 = vmatprep.subr.mxu0 0.0
  %1135 = vmatpush1.msra.mxu0 0.0
  %1136 = vmatprep.subr.mxu0 0.0
  %1137 = vmatpush1.msra.mxu0 0.0
  %1138 = vmatprep.mubr.f32.mxu0 0.0
  %1139 = vmatmul.mubr.f32.gmra.mrb[0].mxu0 %v1072
  %v1140 = vpop.f32.mrb[0].mxu0
  %v1141 = vadd.f32 0.0, %v1140
  %v1142 = vpop.f32.mrb[0].mxu0
  %1143 = vdwg.mxu0
  %v1144 = vadd.f32 %v1068, %v1141
  %v1145 = vxor.u32 %v1144, 2147483648
  %v1146 = vmul.f32 %v1145, 1.442695
  %v1147 = vpow.pop %v1146
  %v1148 = vadd.f32 %v1147, 1.0
  %v1149 = vrcp.pop %v1148
  %v1150 = vmul.f32 1.0, %v1149
  %v1151 = vtanh.pop %v1144
  %v1152 = vsel %vm234, %v1151, %v1150
  %v1153 = vmul.f32 %v1152, %v1060
  %1155 = vrot.lane.b32.xlu0 %v1152, 64
  %v1156 = vpop.permute.xlu0 %1155
  %v1158 = vmul.f32 %v1152, %v1156
  %1160 = vrot.lane.b32.xlu0 %v1158, 32
  %v1161 = vpop.permute.xlu0 %1160
  %v1163 = vadd.f32 %v1153, %v1161
  %v1164 = vtanh.pop %v1163
  %1166 = vrot.lane.b32.xlu0 %v1164, 64
  %v1167 = vpop.permute.xlu0 %1166
  %v1169 = vmul.f32 %v1152, %v1167
  %s1170 = scalar_lea.vmem [#allocation2], 72
  %v1171 = vld [vmem:[%s1170] sm:$0xff]
  %1173 = vrot.lane.b32.xlu0 %v1169, 32
  %v1174 = vpop.permute.xlu0 %1173
  %v1175 = vsel %vm242, %v1174, 0
  %1177 = vmatprep.subr.mxu0 0.0
  %1178 = vmatpush1.msra.mxu0 %v235
  %1179 = vmatprep.subr.mxu0 0.0
  %1180 = vmatpush1.msra.mxu0 %v236
  %1181 = vmatprep.subr.mxu0 0.0
  %1182 = vmatpush1.msra.mxu0 %v237
  %1183 = vmatprep.subr.mxu0 0.0
  %1184 = vmatpush1.msra.mxu0 %v238
  %1185 = vmatprep.subr.mxu0 0.0
  %1186 = vmatpush1.msra.mxu0 0.0
  %1187 = vmatprep.subr.mxu0 0.0
  %1188 = vmatpush1.msra.mxu0 0.0
  %1189 = vmatprep.subr.mxu0 0.0
  %1190 = vmatpush1.msra.mxu0 0.0
  %1191 = vmatprep.subr.mxu0 0.0
  %1192 = vmatpush1.msra.mxu0 0.0
  %1193 = vmatprep.subr.mxu0 0.0
  %1194 = vmatpush1.msra.mxu0 0.0
  %1195 = vmatprep.subr.mxu0 0.0
  %1196 = vmatpush1.msra.mxu0 0.0
  %1197 = vmatprep.subr.mxu0 0.0
  %1198 = vmatpush1.msra.mxu0 0.0
  %1199 = vmatprep.subr.mxu0 0.0
  %1200 = vmatpush1.msra.mxu0 0.0
  %1201 = vmatprep.subr.mxu0 0.0
  %1202 = vmatpush1.msra.mxu0 0.0
  %1203 = vmatprep.subr.mxu0 0.0
  %1204 = vmatpush1.msra.mxu0 0.0
  %1205 = vmatprep.subr.mxu0 0.0
  %1206 = vmatpush1.msra.mxu0 0.0
  %1207 = vmatprep.subr.mxu0 0.0
  %1208 = vmatpush1.msra.mxu0 0.0
  %1209 = vmatprep.subr.mxu0 0.0
  %1210 = vmatpush1.msra.mxu0 0.0
  %1211 = vmatprep.subr.mxu0 0.0
  %1212 = vmatpush1.msra.mxu0 0.0
  %1213 = vmatprep.subr.mxu0 0.0
  %1214 = vmatpush1.msra.mxu0 0.0
  %1215 = vmatprep.subr.mxu0 0.0
  %1216 = vmatpush1.msra.mxu0 0.0
  %1217 = vmatprep.subr.mxu0 0.0
  %1218 = vmatpush1.msra.mxu0 0.0
  %1219 = vmatprep.subr.mxu0 0.0
  %1220 = vmatpush1.msra.mxu0 0.0
  %1221 = vmatprep.subr.mxu0 0.0
  %1222 = vmatpush1.msra.mxu0 0.0
  %1223 = vmatprep.subr.mxu0 0.0
  %1224 = vmatpush1.msra.mxu0 0.0
  %1225 = vmatprep.subr.mxu0 0.0
  %1226 = vmatpush1.msra.mxu0 0.0
  %1227 = vmatprep.subr.mxu0 0.0
  %1228 = vmatpush1.msra.mxu0 0.0
  %1229 = vmatprep.subr.mxu0 0.0
  %1230 = vmatpush1.msra.mxu0 0.0
  %1231 = vmatprep.subr.mxu0 0.0
  %1232 = vmatpush1.msra.mxu0 0.0
  %1233 = vmatprep.subr.mxu0 0.0
  %1234 = vmatpush1.msra.mxu0 0.0
  %1235 = vmatprep.subr.mxu0 0.0
  %1236 = vmatpush1.msra.mxu0 0.0
  %1237 = vmatprep.subr.mxu0 0.0
  %1238 = vmatpush1.msra.mxu0 0.0
  %1239 = vmatprep.subr.mxu0 0.0
  %1240 = vmatpush1.msra.mxu0 0.0
  %1241 = vmatprep.mubr.f32.mxu0 0.0
  %1242 = vmatmul.mubr.f32.gmra.mrb[0].mxu0 %v1175
  %v1243 = vpop.f32.mrb[0].mxu0
  %v1244 = vadd.f32 0.0, %v1243
  %v1245 = vpop.f32.mrb[0].mxu0
  %1246 = vdwg.mxu0
  %v1247 = vadd.f32 %v1171, %v1244
  %v1248 = vxor.u32 %v1247, 2147483648
  %v1249 = vmul.f32 %v1248, 1.442695
  %v1250 = vpow.pop %v1249
  %v1251 = vadd.f32 %v1250, 1.0
  %v1252 = vrcp.pop %v1251
  %v1253 = vmul.f32 1.0, %v1252
  %v1254 = vtanh.pop %v1247
  %v1255 = vsel %vm234, %v1254, %v1253
  %v1256 = vmul.f32 %v1255, %v1163
  %1258 = vrot.lane.b32.xlu0 %v1255, 64
  %v1259 = vpop.permute.xlu0 %1258
  %v1261 = vmul.f32 %v1255, %v1259
  %1263 = vrot.lane.b32.xlu0 %v1261, 32
  %v1264 = vpop.permute.xlu0 %1263
  %v1266 = vadd.f32 %v1256, %v1264
  %v1267 = vtanh.pop %v1266
  %1269 = vrot.lane.b32.xlu0 %v1267, 64
  %v1270 = vpop.permute.xlu0 %1269
  %v1272 = vmul.f32 %v1255, %v1270
  %s1273 = scalar_lea.vmem [#allocation2], 80
  %v1274 = vld [vmem:[%s1273] sm:$0xff]
  %1276 = vrot.lane.b32.xlu0 %v1272, 32
  %v1277 = vpop.permute.xlu0 %1276
  %v1278 = vsel %vm242, %v1277, 0
  %1280 = vmatprep.subr.mxu0 0.0
  %1281 = vmatpush1.msra.mxu0 %v235
  %1282 = vmatprep.subr.mxu0 0.0
  %1283 = vmatpush1.msra.mxu0 %v236
  %1284 = vmatprep.subr.mxu0 0.0
  %1285 = vmatpush1.msra.mxu0 %v237
  %1286 = vmatprep.subr.mxu0 0.0
  %1287 = vmatpush1.msra.mxu0 %v238
  %1288 = vmatprep.subr.mxu0 0.0
  %1289 = vmatpush1.msra.mxu0 0.0
  %1290 = vmatprep.subr.mxu0 0.0
  %1291 = vmatpush1.msra.mxu0 0.0
  %1292 = vmatprep.subr.mxu0 0.0
  %1293 = vmatpush1.msra.mxu0 0.0
  %1294 = vmatprep.subr.mxu0 0.0
  %1295 = vmatpush1.msra.mxu0 0.0
  %1296 = vmatprep.subr.mxu0 0.0
  %1297 = vmatpush1.msra.mxu0 0.0
  %1298 = vmatprep.subr.mxu0 0.0
  %1299 = vmatpush1.msra.mxu0 0.0
  %1300 = vmatprep.subr.mxu0 0.0
  %1301 = vmatpush1.msra.mxu0 0.0
  %1302 = vmatprep.subr.mxu0 0.0
  %1303 = vmatpush1.msra.mxu0 0.0
  %1304 = vmatprep.subr.mxu0 0.0
  %1305 = vmatpush1.msra.mxu0 0.0
  %1306 = vmatprep.subr.mxu0 0.0
  %1307 = vmatpush1.msra.mxu0 0.0
  %1308 = vmatprep.subr.mxu0 0.0
  %1309 = vmatpush1.msra.mxu0 0.0
  %1310 = vmatprep.subr.mxu0 0.0
  %1311 = vmatpush1.msra.mxu0 0.0
  %1312 = vmatprep.subr.mxu0 0.0
  %1313 = vmatpush1.msra.mxu0 0.0
  %1314 = vmatprep.subr.mxu0 0.0
  %1315 = vmatpush1.msra.mxu0 0.0
  %1316 = vmatprep.subr.mxu0 0.0
  %1317 = vmatpush1.msra.mxu0 0.0
  %1318 = vmatprep.subr.mxu0 0.0
  %1319 = vmatpush1.msra.mxu0 0.0
  %1320 = vmatprep.subr.mxu0 0.0
  %1321 = vmatpush1.msra.mxu0 0.0
  %1322 = vmatprep.subr.mxu0 0.0
  %1323 = vmatpush1.msra.mxu0 0.0
  %1324 = vmatprep.subr.mxu0 0.0
  %1325 = vmatpush1.msra.mxu0 0.0
  %1326 = vmatprep.subr.mxu0 0.0
  %1327 = vmatpush1.msra.mxu0 0.0
  %1328 = vmatprep.subr.mxu0 0.0
  %1329 = vmatpush1.msra.mxu0 0.0
  %1330 = vmatprep.subr.mxu0 0.0
  %1331 = vmatpush1.msra.mxu0 0.0
  %1332 = vmatprep.subr.mxu0 0.0
  %1333 = vmatpush1.msra.mxu0 0.0
  %1334 = vmatprep.subr.mxu0 0.0
  %1335 = vmatpush1.msra.mxu0 0.0
  %1336 = vmatprep.subr.mxu0 0.0
  %1337 = vmatpush1.msra.mxu0 0.0
  %1338 = vmatprep.subr.mxu0 0.0
  %1339 = vmatpush1.msra.mxu0 0.0
  %1340 = vmatprep.subr.mxu0 0.0
  %1341 = vmatpush1.msra.mxu0 0.0
  %1342 = vmatprep.subr.mxu0 0.0
  %1343 = vmatpush1.msra.mxu0 0.0
  %1344 = vmatprep.mubr.f32.mxu0 0.0
  %1345 = vmatmul.mubr.f32.gmra.mrb[0].mxu0 %v1278
  %v1346 = vpop.f32.mrb[0].mxu0
  %v1347 = vadd.f32 0.0, %v1346
  %v1348 = vpop.f32.mrb[0].mxu0
  %1349 = vdwg.mxu0
  %v1350 = vadd.f32 %v1274, %v1347
  %v1351 = vxor.u32 %v1350, 2147483648
  %v1352 = vmul.f32 %v1351, 1.442695
  %v1353 = vpow.pop %v1352
  %v1354 = vadd.f32 %v1353, 1.0
  %v1355 = vrcp.pop %v1354
  %v1356 = vmul.f32 1.0, %v1355
  %v1357 = vtanh.pop %v1350
  %v1358 = vsel %vm234, %v1357, %v1356
  %v1359 = vmul.f32 %v1358, %v1266
  %1361 = vrot.lane.b32.xlu0 %v1358, 64
  %v1362 = vpop.permute.xlu0 %1361
  %v1364 = vmul.f32 %v1358, %v1362
  %1366 = vrot.lane.b32.xlu0 %v1364, 32
  %v1367 = vpop.permute.xlu0 %1366
  %v1369 = vadd.f32 %v1359, %v1367
  %v1370 = vtanh.pop %v1369
  %1372 = vrot.lane.b32.xlu0 %v1370, 64
  %v1373 = vpop.permute.xlu0 %1372
  %v1375 = vmul.f32 %v1358, %v1373
  %s1376 = scalar_lea.vmem [#allocation2], 88
  %v1377 = vld [vmem:[%s1376] sm:$0xff]
  %1379 = vrot.lane.b32.xlu0 %v1375, 32
  %v1380 = vpop.permute.xlu0 %1379
  %v1381 = vsel %vm242, %v1380, 0
  %1383 = vmatprep.subr.mxu0 0.0
  %1384 = vmatpush1.msra.mxu0 %v235
  %1385 = vmatprep.subr.mxu0 0.0
  %1386 = vmatpush1.msra.mxu0 %v236
  %1387 = vmatprep.subr.mxu0 0.0
  %1388 = vmatpush1.msra.mxu0 %v237
  %1389 = vmatprep.subr.mxu0 0.0
  %1390 = vmatpush1.msra.mxu0 %v238
  %1391 = vmatprep.subr.mxu0 0.0
  %1392 = vmatpush1.msra.mxu0 0.0
  %1393 = vmatprep.subr.mxu0 0.0
  %1394 = vmatpush1.msra.mxu0 0.0
  %1395 = vmatprep.subr.mxu0 0.0
  %1396 = vmatpush1.msra.mxu0 0.0
  %1397 = vmatprep.subr.mxu0 0.0
  %1398 = vmatpush1.msra.mxu0 0.0
  %1399 = vmatprep.subr.mxu0 0.0
  %1400 = vmatpush1.msra.mxu0 0.0
  %1401 = vmatprep.subr.mxu0 0.0
  %1402 = vmatpush1.msra.mxu0 0.0
  %1403 = vmatprep.subr.mxu0 0.0
  %1404 = vmatpush1.msra.mxu0 0.0
  %1405 = vmatprep.subr.mxu0 0.0
  %1406 = vmatpush1.msra.mxu0 0.0
  %1407 = vmatprep.subr.mxu0 0.0
  %1408 = vmatpush1.msra.mxu0 0.0
  %1409 = vmatprep.subr.mxu0 0.0
  %1410 = vmatpush1.msra.mxu0 0.0
  %1411 = vmatprep.subr.mxu0 0.0
  %1412 = vmatpush1.msra.mxu0 0.0
  %1413 = vmatprep.subr.mxu0 0.0
  %1414 = vmatpush1.msra.mxu0 0.0
  %1415 = vmatprep.subr.mxu0 0.0
  %1416 = vmatpush1.msra.mxu0 0.0
  %1417 = vmatprep.subr.mxu0 0.0
  %1418 = vmatpush1.msra.mxu0 0.0
  %1419 = vmatprep.subr.mxu0 0.0
  %1420 = vmatpush1.msra.mxu0 0.0
  %1421 = vmatprep.subr.mxu0 0.0
  %1422 = vmatpush1.msra.mxu0 0.0
  %1423 = vmatprep.subr.mxu0 0.0
  %1424 = vmatpush1.msra.mxu0 0.0
  %1425 = vmatprep.subr.mxu0 0.0
  %1426 = vmatpush1.msra.mxu0 0.0
  %1427 = vmatprep.subr.mxu0 0.0
  %1428 = vmatpush1.msra.mxu0 0.0
  %1429 = vmatprep.subr.mxu0 0.0
  %1430 = vmatpush1.msra.mxu0 0.0
  %1431 = vmatprep.subr.mxu0 0.0
  %1432 = vmatpush1.msra.mxu0 0.0
  %1433 = vmatprep.subr.mxu0 0.0
  %1434 = vmatpush1.msra.mxu0 0.0
  %1435 = vmatprep.subr.mxu0 0.0
  %1436 = vmatpush1.msra.mxu0 0.0
  %1437 = vmatprep.subr.mxu0 0.0
  %1438 = vmatpush1.msra.mxu0 0.0
  %1439 = vmatprep.subr.mxu0 0.0
  %1440 = vmatpush1.msra.mxu0 0.0
  %1441 = vmatprep.subr.mxu0 0.0
  %1442 = vmatpush1.msra.mxu0 0.0
  %1443 = vmatprep.subr.mxu0 0.0
  %1444 = vmatpush1.msra.mxu0 0.0
  %1445 = vmatprep.subr.mxu0 0.0
  %1446 = vmatpush1.msra.mxu0 0.0
  %1447 = vmatprep.mubr.f32.mxu0 0.0
  %1448 = vmatmul.mubr.f32.gmra.mrb[0].mxu0 %v1381
  %v1449 = vpop.f32.mrb[0].mxu0
  %v1450 = vadd.f32 0.0, %v1449
  %v1451 = vpop.f32.mrb[0].mxu0
  %1452 = vdwg.mxu0
  %v1453 = vadd.f32 %v1377, %v1450
  %v1454 = vxor.u32 %v1453, 2147483648
  %v1455 = vmul.f32 %v1454, 1.442695
  %v1456 = vpow.pop %v1455
  %v1457 = vadd.f32 %v1456, 1.0
  %v1458 = vrcp.pop %v1457
  %v1459 = vmul.f32 1.0, %v1458
  %v1460 = vtanh.pop %v1453
  %v1461 = vsel %vm234, %v1460, %v1459
  %v1462 = vmul.f32 %v1461, %v1369
  %1464 = vrot.lane.b32.xlu0 %v1461, 64
  %v1465 = vpop.permute.xlu0 %1464
  %v1467 = vmul.f32 %v1461, %v1465
  %1469 = vrot.lane.b32.xlu0 %v1467, 32
  %v1470 = vpop.permute.xlu0 %1469
  %v1472 = vadd.f32 %v1462, %v1470
  %v1473 = vtanh.pop %v1472
  %1475 = vrot.lane.b32.xlu0 %v1473, 64
  %v1476 = vpop.permute.xlu0 %1475
  %v1478 = vmul.f32 %v1461, %v1476
  %v1479 = vld [vmem:[%s6] sm:$0xff]
  %v1480 = vld [vmem:[%s6 + $0x8] sm:$0xff]
  %v1481 = vld [vmem:[%s6 + $0x10] sm:$0xff]
  %v1482 = vld [vmem:[%s6 + $0x18] sm:$0xff]
  %v1483 = vld [vmem:[%s7] sm:$0x1]
  %v1485 = vlaneseq
  %v1486 = vshrl.u32 %v1485, 7
  %v1487 = vsub.s32 0, %v1486
  %v1488 = vrot.slane %v1483, %v1487
  %1491 = vrot.lane.b32.xlu0 %v1478, 32
  %v1492 = vpop.permute.xlu0 %1491
  %v1493 = vsel %vm242, %v1492, 0
  %1495 = vmatprep.subr.mxu0 0.0
  %1496 = vmatpush1.msra.mxu0 %v1479
  %1497 = vmatprep.subr.mxu0 0.0
  %1498 = vmatpush1.msra.mxu0 %v1480
  %1499 = vmatprep.subr.mxu0 0.0
  %1500 = vmatpush1.msra.mxu0 %v1481
  %1501 = vmatprep.subr.mxu0 0.0
  %1502 = vmatpush1.msra.mxu0 %v1482
  %1503 = vmatprep.subr.mxu0 0.0
  %1504 = vmatpush1.msra.mxu0 0.0
  %1505 = vmatprep.subr.mxu0 0.0
  %1506 = vmatpush1.msra.mxu0 0.0
  %1507 = vmatprep.subr.mxu0 0.0
  %1508 = vmatpush1.msra.mxu0 0.0
  %1509 = vmatprep.subr.mxu0 0.0
  %1510 = vmatpush1.msra.mxu0 0.0
  %1511 = vmatprep.subr.mxu0 0.0
  %1512 = vmatpush1.msra.mxu0 0.0
  %1513 = vmatprep.subr.mxu0 0.0
  %1514 = vmatpush1.msra.mxu0 0.0
  %1515 = vmatprep.subr.mxu0 0.0
  %1516 = vmatpush1.msra.mxu0 0.0
  %1517 = vmatprep.subr.mxu0 0.0
  %1518 = vmatpush1.msra.mxu0 0.0
  %1519 = vmatprep.subr.mxu0 0.0
  %1520 = vmatpush1.msra.mxu0 0.0
  %1521 = vmatprep.subr.mxu0 0.0
  %1522 = vmatpush1.msra.mxu0 0.0
  %1523 = vmatprep.subr.mxu0 0.0
  %1524 = vmatpush1.msra.mxu0 0.0
  %1525 = vmatprep.subr.mxu0 0.0
  %1526 = vmatpush1.msra.mxu0 0.0
  %1527 = vmatprep.subr.mxu0 0.0
  %1528 = vmatpush1.msra.mxu0 0.0
  %1529 = vmatprep.subr.mxu0 0.0
  %1530 = vmatpush1.msra.mxu0 0.0
  %1531 = vmatprep.subr.mxu0 0.0
  %1532 = vmatpush1.msra.mxu0 0.0
  %1533 = vmatprep.subr.mxu0 0.0
  %1534 = vmatpush1.msra.mxu0 0.0
  %1535 = vmatprep.subr.mxu0 0.0
  %1536 = vmatpush1.msra.mxu0 0.0
  %1537 = vmatprep.subr.mxu0 0.0
  %1538 = vmatpush1.msra.mxu0 0.0
  %1539 = vmatprep.subr.mxu0 0.0
  %1540 = vmatpush1.msra.mxu0 0.0
  %1541 = vmatprep.subr.mxu0 0.0
  %1542 = vmatpush1.msra.mxu0 0.0
  %1543 = vmatprep.subr.mxu0 0.0
  %1544 = vmatpush1.msra.mxu0 0.0
  %1545 = vmatprep.subr.mxu0 0.0
  %1546 = vmatpush1.msra.mxu0 0.0
  %1547 = vmatprep.subr.mxu0 0.0
  %1548 = vmatpush1.msra.mxu0 0.0
  %1549 = vmatprep.subr.mxu0 0.0
  %1550 = vmatpush1.msra.mxu0 0.0
  %1551 = vmatprep.subr.mxu0 0.0
  %1552 = vmatpush1.msra.mxu0 0.0
  %1553 = vmatprep.subr.mxu0 0.0
  %1554 = vmatpush1.msra.mxu0 0.0
  %1555 = vmatprep.subr.mxu0 0.0
  %1556 = vmatpush1.msra.mxu0 0.0
  %1557 = vmatprep.subr.mxu0 0.0
  %1558 = vmatpush1.msra.mxu0 0.0
  %1559 = vmatprep.mubr.f32.mxu0 0.0
  %1560 = vmatmul.mubr.f32.gmra.mrb[0].mxu0 %v1493
  %v1561 = vpop.f32.mrb[0].mxu0
  %v1562 = vadd.f32 %v1488, %v1561
  %v1563 = vpop.f32.mrb[0].mxu0
  %1564 = vdwg.mxu0
  %vm1565 = vcmask 15360
  %v1566 = vsel %vm1565, %v1562, -inf
  %1567 = vmax.xlane.f32.xlu0 %v1566
  %v1568 = vpop.xlane.xlu0 %1567
  %v1569 = vsub.f32 %v1562, %v1568
  %v1570 = vmul.f32 %v1569, 1.442695
  %v1571 = vpow.pop %v1570
  %v1572 = vsel %vm1565, %v1571, 0.0
  %1573 = vadd.xlane.f32.xlu0 %v1572
  %v1574 = vpop.xlane.xlu0 %1573
  %v1575 = vlog2.pop %v1574
  %v1576 = vmul.f32 %v1575, 0.6931472
  %v1577 = vsub.f32 %v1569, %v1576
  %1578 = vst.msk [vmem:[%s8] sm:$0xff] %vm1565, %v1577
  // Predicated region
  $region34: #{tpu_custom_call.1} parent=0 // pred_check
    _
  $region35: #{tpu_custom_call.1} parent=0 // pred_check_branch
    %1580 = sbr.rel (0) target = $region37
  $region36: #{tpu_custom_call.1} parent=0 // pred_region
    _
  $region37: #{tpu_custom_call.1} parent=0 // pred_fallthru
    _
  // Predicated region
  $region38: #{tpu_custom_call.1} parent=0 // pred_check
    _
  $region39: #{tpu_custom_call.1} parent=0 // pred_check_branch
    %1582 = sbr.rel (0) target = $region41
  $region40: #{tpu_custom_call.1} parent=0 // pred_region
    _
  $region41: #{tpu_custom_call.1} parent=0 // pred_fallthru
    _

</llo_original>
